<compile_context>
chip_gen: v7x
topology: tpu7x:2x2x1
jax: 0.10.0
libtpu: 0.0.40
codegen_flags: <defaults>
</compile_context>

<pallas_src>
import jax
import jax.numpy as jnp
from jax.experimental import pallas as pl
from jax.experimental.pallas import tpu as pltpu


# ----------------------------- Pallas kernel ---------------------------------
def make_rppnet_kernel(step_size):
    f32 = jnp.float32

    def kernel(x0_ref, h0_ref,
               wx_ref, bx_ref,                 # fused [encoder-L0 | HNN-L1] weights / biases
               weg_ref, beg_ref,               # enc-final folded into GRU W_ih, gate-major (3,E,H)/(3,1,H)
               whh_ref, bhh_ref,               # GRU W_hh gate-major (3,H,H)/(3,1,H)
               dw0_ref, db0_ref, dwf_ref, dbf_ref,   # decoder FCtanh + Linear
               hw2_ref, hw1tj_ref,             # HNN second layer w2, and W1^T J^T (J folded)
               traj_ref, hfin_ref,             # outputs (VMEM-resident across the grid)
               x_scr, h_scr):                  # VMEM carries across grid steps
        t = pl.program_id(0)

        @pl.when(t == 0)
        def _init():
            x_scr[...] = x0_ref[...]
            h_scr[...] = h0_ref[...]

        x = x_scr[...]                          # (B, D)
        h = h_scr[...]                          # (B, H)
        E = weg_ref.shape[1]                    # encoder hidden width (static)

        # --- fused first layer: tanh(x @ [enc_w0 | ham_w1] + [enc_b0 | ham_b1]) ---
        cmb = jnp.tanh(jnp.dot(x, wx_ref[...], preferred_element_type=f32) + bx_ref[...])
        e = cmb[:, :E]                          # encoder FCtanh output       (B, E)
        ta = cmb[:, E:]                         # tanh of HNN pre-activation  (B, Hh)

        # --- GRU cell, PyTorch gate order (r, z, n); gate index on the leading axis ---
        gh_r = jnp.dot(h, whh_ref[0], preferred_element_type=f32) + bhh_ref[0]
        gh_z = jnp.dot(h, whh_ref[1], preferred_element_type=f32) + bhh_ref[1]
        gh_n = jnp.dot(h, whh_ref[2], preferred_element_type=f32) + bhh_ref[2]
        gi_r = jnp.dot(e, weg_ref[0], preferred_element_type=f32) + beg_ref[0]
        gi_z = jnp.dot(e, weg_ref[1], preferred_element_type=f32) + beg_ref[1]
        gi_n = jnp.dot(e, weg_ref[2], preferred_element_type=f32) + beg_ref[2]
        r = jax.nn.sigmoid(gi_r + gh_r)
        z = jax.nn.sigmoid(gi_z + gh_z)
        n = jnp.tanh(gi_n + r * gh_n)
        h_new = (1.0 - z) * n + z * h

        # --- decoder: FCtanh then Linear (final layer init N(0,1e-4), bias 0) ---
        d = jnp.tanh(jnp.dot(h_new, dw0_ref[...], preferred_element_type=f32) + db0_ref[...])
        dec_out = jnp.dot(d, dwf_ref[...], preferred_element_type=f32) + dbf_ref[...]

        # --- HNN field: ((1 - tanh^2(a)) * w2) @ (W1^T J^T); J folded into the weight ---
        s = (1.0 - ta * ta) * hw2_ref[...]
        ham_out = jnp.dot(s, hw1tj_ref[...], preferred_element_type=f32)

        dx_dt = dec_out + ham_out
        x_new = x + step_size * dx_dt           # explicit-Euler update, fused in-kernel

        x_scr[...] = x_new
        h_scr[...] = h_new
        traj_ref[t] = x_new                     # row t of the VMEM-resident trajectory block
        hfin_ref[...] = h_new                   # resident; written back to HBM once at the end

    return kernel


# ------------------------- host-side parameter repacking -----------------------
def prepare_kernel_params(p):
    """Constant folding / repacking of RPPNet parameters for the fused kernel."""
    hi = jax.lax.Precision.HIGHEST
    H = p["gru_whh"].shape[0]
    # gate-major GRU weights: columns of (in, 3H) are [r | z | n] blocks of width H
    wih3 = p["gru_wih"].reshape(H, 3, H).transpose(1, 0, 2)      # (3, H, H)
    whh3 = p["gru_whh"].reshape(H, 3, H).transpose(1, 0, 2)      # (3, H, H)
    bih3 = p["gru_bih"].reshape(1, 3, H).transpose(1, 0, 2)      # (3, 1, H)
    bhh3 = p["gru_bhh"].reshape(1, 3, H).transpose(1, 0, 2)      # (3, 1, H)
    kp = {}
    # fused first layer: encoder layer-0 and HNN layer-1 both consume x
    kp["wx"] = jnp.concatenate([p["enc_w0"], p["ham_w1"]], axis=1)      # (D, E+Hh)
    kp["bx"] = jnp.concatenate([p["enc_b0"], p["ham_b1"]], axis=1)      # (1, E+Hh)
    # encoder final Linear folded into GRU input-to-hidden weights (both linear in emb)
    kp["w_eg"] = jnp.einsum("eh,ghk->gek", p["enc_wf"], wih3, precision=hi)          # (3, E, H)
    kp["b_eg"] = jnp.einsum("oh,ghk->gok", p["enc_bf"], wih3, precision=hi) + bih3   # (3, 1, H)
    kp["whh3"] = whh3
    kp["bhh3"] = bhh3
    # symplectic J^T folded into the HNN backward weight: grad @ J^T == s @ (W1^T @ J^T)
    kp["ham_w1tj"] = jnp.matmul(p["ham_w1"].T, p["ham_jt"], precision=hi)            # (Hh, D)
    return kp


# ------------------------------- wrapper --------------------------------------
def rppnet_integrate(x0, h0, params, n_steps, step_size=1.0):
    """Fused Euler integration: returns (x trajectory (T, B, D), final hidden (1, B, H))."""
    B, D = x0.shape
    H = params["gru_whh"].shape[0]
    kp = prepare_kernel_params(params)
    args = (x0, h0[0],
            kp["wx"], kp["bx"], kp["w_eg"], kp["b_eg"], kp["whh3"], kp["bhh3"],
            params["dec_w0"], params["dec_b0"], params["dec_wf"], params["dec_bf"],
            params["ham_w2"], kp["ham_w1tj"])

    def const_spec(a):   # full-array block, constant index_map -> loaded once, resident
        if a.ndim == 2:
            return pl.BlockSpec(a.shape, lambda t: (0, 0))
        if a.ndim == 3:
            return pl.BlockSpec(a.shape, lambda t: (0, 0, 0))
        raise ValueError("unexpected rank")

    grid_spec = pltpu.PrefetchScalarGridSpec(
        num_scalar_prefetch=0,
        grid=(n_steps,),
        in_specs=[const_spec(a) for a in args],
        out_specs=[
            pl.BlockSpec((n_steps, B, D), lambda t: (0, 0, 0)),   # trajectory, VMEM-resident
            pl.BlockSpec((B, H), lambda t: (0, 0)),               # final hidden, VMEM-resident
        ],
        scratch_shapes=[pltpu.VMEM((B, D), jnp.float32),          # x carry
                        pltpu.VMEM((B, H), jnp.float32)],         # h carry
    )
    traj, h_fin = pl.pallas_call(
        make_rppnet_kernel(step_size),
        out_shape=(jax.ShapeDtypeStruct((n_steps, B, D), jnp.float32),
                   jax.ShapeDtypeStruct((B, H), jnp.float32)),
        grid_spec=grid_spec,
        compiler_params=pltpu.CompilerParams(dimension_semantics=("arbitrary",)),
    )(*args)
    return traj, h_fin[None]


# --------------------------- pure-JAX reference --------------------------------
def reference_integrate(x0, h0, p, n_steps, step_size=1.0):
    """Unfolded reference loop; HNN gradient via autodiff (checks the analytic path)."""
    H = p["gru_whh"].shape[0]

    def ham_field(xb):
        def ham_scalar(z1):
            return jnp.tanh(z1 @ p["ham_w1"] + p["ham_b1"][0]) @ p["ham_w2"][0]
        grad = jax.vmap(jax.grad(ham_scalar))(xb)
        return grad @ p["ham_jt"]

    x = x0
    h = h0[0]
    traj = []
    for _ in range(n_steps):
        e = jnp.tanh(x @ p["enc_w0"] + p["enc_b0"])
        emb = e @ p["enc_wf"] + p["enc_bf"]
        gi = emb @ p["gru_wih"] + p["gru_bih"]
        gh = h @ p["gru_whh"] + p["gru_bhh"]
        r = jax.nn.sigmoid(gi[:, :H] + gh[:, :H])
        z = jax.nn.sigmoid(gi[:, H:2 * H] + gh[:, H:2 * H])
        n = jnp.tanh(gi[:, 2 * H:] + r * gh[:, 2 * H:])
        h = (1.0 - z) * n + z * h
        d = jnp.tanh(h @ p["dec_w0"] + p["dec_b0"])
        dec_out = d @ p["dec_wf"] + p["dec_bf"]
        dx_dt = dec_out + ham_field(x)
        x = x + step_size * dx_dt
        traj.append(x)
    return jnp.stack(traj, axis=0), h[None]


# ------------------------------ parameter init ---------------------------------
def init_params(key, d_in, d_out, enc_h, rec_h, dec_h, ham_h):
    ks = iter(jax.random.split(key, 20))
    w = lambda k, shp, std: std * jax.random.normal(k, shp, jnp.float32)

    p = {}
    # encoder: make_mlp(d_in, enc_h, rec_h, depth=1)
    p["enc_w0"] = w(next(ks), (d_in, enc_h), 1.0 / jnp.sqrt(d_in))
    p["enc_b0"] = w(next(ks), (1, enc_h), 0.01)
    p["enc_wf"] = w(next(ks), (enc_h, rec_h), 1.0 / jnp.sqrt(enc_h))
    p["enc_bf"] = w(next(ks), (1, rec_h), 0.01)
    # GRU (rec_depth = 1), gates concatenated as [r | z | n]
    p["gru_wih"] = w(next(ks), (rec_h, 3 * rec_h), 1.0 / jnp.sqrt(rec_h))
    p["gru_whh"] = w(next(ks), (rec_h, 3 * rec_h), 1.0 / jnp.sqrt(rec_h))
    p["gru_bih"] = w(next(ks), (1, 3 * rec_h), 0.01)
    p["gru_bhh"] = w(next(ks), (1, 3 * rec_h), 0.01)
    # decoder: make_mlp(rec_h, dec_h, d_out, depth=1); final layer re-init per RPPNet.__init__
    p["dec_w0"] = w(next(ks), (rec_h, dec_h), 1.0 / jnp.sqrt(rec_h))
    p["dec_b0"] = w(next(ks), (1, dec_h), 0.01)
    p["dec_wf"] = w(next(ks), (dec_h, d_out), 1e-4)           # normal_(std=1e-4)
    p["dec_bf"] = jnp.zeros((1, d_out), jnp.float32)           # constant_(0.0)
    # HNN Hamiltonian MLP
    p["ham_w1"] = w(next(ks), (d_in, ham_h), 1.0 / jnp.sqrt(d_in))
    p["ham_b1"] = w(next(ks), (1, ham_h), 0.01)
    p["ham_w2"] = w(next(ks), (1, ham_h), 1.0 / jnp.sqrt(ham_h))
    # symplectic matrix J = [[0, I], [-I, 0]]; field = grad @ J^T
    nh = d_in // 2
    I = jnp.eye(nh, dtype=jnp.float32)
    Z = jnp.zeros((nh, nh), jnp.float32)
    J = jnp.block([[Z, I], [-I, Z]])
    p["ham_jt"] = J.T
    return p


# ----------------------------------- main ---------------------------------------
if __name__ == "__main__":
    B = 8            # batch
    D = 8            # input_size == output_size (even: (q, p) pairs)
    ENC_H = REC_H = DEC_H = HAM_H = 32   # enc/rec/dec depths = 1, rec_depth = 1
    T = 8            # number of Euler integration steps (ts has T+1 points)
    STEP = 1.0       # RecNODE step_size

    key = jax.random.PRNGKey(0)
    k_par, k_x = jax.random.split(key)
    params = init_params(k_par, D, D, ENC_H, REC_H, DEC_H, HAM_H)

    x0 = jax.random.normal(k_x, (B, D), jnp.float32)
    h0 = jnp.zeros((1, B, REC_H), jnp.float32)     # init_hidden_state (rec_depth=1)

    # single fused pallas_call runs the full T-step Euler integration
    traj, h_fin = rppnet_integrate(x0, h0, params, n_steps=T, step_size=STEP)
    jax.block_until_ready((traj, h_fin))

    # correctness vs pure-JAX reference (unfolded weights, autodiff HNN gradient)
    ref_traj, ref_h = reference_integrate(x0, h0, params, n_steps=T, step_size=STEP)
    assert jnp.allclose(traj, ref_traj, atol=2e-4, rtol=2e-4), \
        float(jnp.max(jnp.abs(traj - ref_traj)))
    assert jnp.allclose(h_fin, ref_h, atol=2e-4, rtol=2e-4), \
        float(jnp.max(jnp.abs(h_fin - ref_h)))

    # full predicted trajectory as RPPNet.integrate would return: [x_0, x_1, ..., x_T]
    pred_x = jnp.concatenate([x0[None], traj], axis=0)
    jax.block_until_ready(pred_x)

    print("KERNEL_OK")
</pallas_src>

<mosaic_0001>
module attributes {stable_mosaic.version = 11 : i64} {
  func.func @kernel(%arg0: i32, %arg1: memref<8x8xf32, #tpu.memory_space<vmem>>, %arg2: memref<8x32xf32, #tpu.memory_space<vmem>>, %arg3: memref<8x64xf32, #tpu.memory_space<vmem>>, %arg4: memref<1x64xf32, #tpu.memory_space<vmem>>, %arg5: memref<3x32x32xf32, #tpu.memory_space<vmem>>, %arg6: memref<3x1x32xf32, #tpu.memory_space<vmem>>, %arg7: memref<3x32x32xf32, #tpu.memory_space<vmem>>, %arg8: memref<3x1x32xf32, #tpu.memory_space<vmem>>, %arg9: memref<32x32xf32, #tpu.memory_space<vmem>>, %arg10: memref<1x32xf32, #tpu.memory_space<vmem>>, %arg11: memref<32x8xf32, #tpu.memory_space<vmem>>, %arg12: memref<1x8xf32, #tpu.memory_space<vmem>>, %arg13: memref<1x32xf32, #tpu.memory_space<vmem>>, %arg14: memref<32x8xf32, #tpu.memory_space<vmem>>, %arg15: memref<8x8x8xf32, #tpu.memory_space<vmem>>, %arg16: memref<8x32xf32, #tpu.memory_space<vmem>>, %arg17: memref<8x8xf32, #tpu.memory_space<vmem>>, %arg18: memref<8x32xf32, #tpu.memory_space<vmem>>) attributes {dimension_semantics = [#tpu.dimension_semantics<arbitrary>], iteration_bounds = array<i64: 8>, scalar_prefetch = 0 : i64, scratch_operands = 2 : i64, tpu.core_type = #tpu.core_type<tc>, window_params = [{pipeline_mode = #tpu.pipeline_mode<synchronous>, transform_indices = @transform_0, window_bounds = array<i64: 8, 8>}, {pipeline_mode = #tpu.pipeline_mode<synchronous>, transform_indices = @transform_1, window_bounds = array<i64: 8, 32>}, {pipeline_mode = #tpu.pipeline_mode<synchronous>, transform_indices = @transform_2, window_bounds = array<i64: 8, 64>}, {pipeline_mode = #tpu.pipeline_mode<synchronous>, transform_indices = @transform_3, window_bounds = array<i64: 1, 64>}, {pipeline_mode = #tpu.pipeline_mode<synchronous>, transform_indices = @transform_4, window_bounds = array<i64: 3, 32, 32>}, {pipeline_mode = #tpu.pipeline_mode<synchronous>, transform_indices = @transform_5, window_bounds = array<i64: 3, 1, 32>}, {pipeline_mode = #tpu.pipeline_mode<synchronous>, transform_indices = @transform_6, window_bounds = array<i64: 3, 32, 32>}, {pipeline_mode = #tpu.pipeline_mode<synchronous>, transform_indices = @transform_7, window_bounds = array<i64: 3, 1, 32>}, {pipeline_mode = #tpu.pipeline_mode<synchronous>, transform_indices = @transform_8, window_bounds = array<i64: 32, 32>}, {pipeline_mode = #tpu.pipeline_mode<synchronous>, transform_indices = @transform_9, window_bounds = array<i64: 1, 32>}, {pipeline_mode = #tpu.pipeline_mode<synchronous>, transform_indices = @transform_10, window_bounds = array<i64: 32, 8>}, {pipeline_mode = #tpu.pipeline_mode<synchronous>, transform_indices = @transform_11, window_bounds = array<i64: 1, 8>}, {pipeline_mode = #tpu.pipeline_mode<synchronous>, transform_indices = @transform_12, window_bounds = array<i64: 1, 32>}, {pipeline_mode = #tpu.pipeline_mode<synchronous>, transform_indices = @transform_13, window_bounds = array<i64: 32, 8>}, {pipeline_mode = #tpu.pipeline_mode<synchronous>, transform_indices = @transform_14, window_bounds = array<i64: 8, 8, 8>}, {pipeline_mode = #tpu.pipeline_mode<synchronous>, transform_indices = @transform_15, window_bounds = array<i64: 8, 32>}]} {
    %c0_i32 = arith.constant 0 : i32
    %0 = arith.cmpi eq, %arg0, %c0_i32 : i32
    %1 = arith.extui %0 : i1 to i32
    %c0_i32_0 = arith.constant 0 : i32
    %2 = arith.cmpi ne, %1, %c0_i32_0 : i32
    scf.if %2 {
      %c0_76 = arith.constant 0 : index
      %c0_77 = arith.constant 0 : index
      %105 = vector.load %arg1[%c0_76, %c0_77] : memref<8x8xf32, #tpu.memory_space<vmem>>, vector<8x8xf32>
      %c0_78 = arith.constant 0 : index
      %c0_79 = arith.constant 0 : index
      %106 = vector.load %arg17[%c0_78, %c0_79] : memref<8x8xf32, #tpu.memory_space<vmem>>, vector<8x8xf32>
      tpu.vector_store %arg17[%c0_78, %c0_79], %105 {strides = array<i32>} : memref<8x8xf32, #tpu.memory_space<vmem>>, vector<8x8xf32>,
      %c0_80 = arith.constant 0 : index
      %c0_81 = arith.constant 0 : index
      %107 = vector.load %arg2[%c0_80, %c0_81] : memref<8x32xf32, #tpu.memory_space<vmem>>, vector<8x32xf32>
      %c0_82 = arith.constant 0 : index
      %c0_83 = arith.constant 0 : index
      %108 = vector.load %arg18[%c0_82, %c0_83] : memref<8x32xf32, #tpu.memory_space<vmem>>, vector<8x32xf32>
      tpu.vector_store %arg18[%c0_82, %c0_83], %107 {strides = array<i32>} : memref<8x32xf32, #tpu.memory_space<vmem>>, vector<8x32xf32>,
    } else {
    }
    %c0 = arith.constant 0 : index
    %c0_1 = arith.constant 0 : index
    %3 = vector.load %arg17[%c0, %c0_1] : memref<8x8xf32, #tpu.memory_space<vmem>>, vector<8x8xf32>
    %c0_2 = arith.constant 0 : index
    %c0_3 = arith.constant 0 : index
    %4 = vector.load %arg18[%c0_2, %c0_3] : memref<8x32xf32, #tpu.memory_space<vmem>>, vector<8x32xf32>
    %c0_4 = arith.constant 0 : index
    %c0_5 = arith.constant 0 : index
    %5 = vector.load %arg3[%c0_4, %c0_5] : memref<8x64xf32, #tpu.memory_space<vmem>>, vector<8x64xf32>
    %cst = arith.constant dense<0.000000e+00> : vector<8x64xf32>
    %6 = tpu.matmul %3, %5, %cst {dimension_numbers = #tpu.dot_dimension_numbers<[1], [0], [0], [1], [0, 0, 1, 1], [], []>} : vector<8x8xf32>, vector<8x64xf32>, vector<8x64xf32> -> vector<8x64xf32>
    %c0_6 = arith.constant 0 : index
    %c0_7 = arith.constant 0 : index
    %7 = vector.load %arg4[%c0_6, %c0_7] : memref<1x64xf32, #tpu.memory_space<vmem>>, vector<1x64xf32>
    %8 = vector.broadcast %7 : vector<1x64xf32> to vector<8x64xf32>
    %9 = arith.addf %6, %8 : vector<8x64xf32>
    %10 = math.tanh %9 : vector<8x64xf32>
    %11 = vector.extract_strided_slice %10 {offsets = [0, 0], sizes = [8, 32], strides = [1, 1]} : vector<8x64xf32> to vector<8x32xf32>
    %12 = vector.extract_strided_slice %10 {offsets = [0, 32], sizes = [8, 32], strides = [1, 1]} : vector<8x64xf32> to vector<8x32xf32>
    %c0_8 = arith.constant 0 : index
    %c0_9 = arith.constant 0 : index
    %c0_10 = arith.constant 0 : index
    %13 = vector.load %arg7[%c0_8, %c0_9, %c0_10] : memref<3x32x32xf32, #tpu.memory_space<vmem>>, vector<1x32x32xf32>
    %14 = vector.shape_cast %13 : vector<1x32x32xf32> to vector<32x32xf32>
    %cst_11 = arith.constant dense<0.000000e+00> : vector<8x32xf32>
    %15 = tpu.matmul %4, %14, %cst_11 {dimension_numbers = #tpu.dot_dimension_numbers<[1], [0], [0], [1], [0, 0, 1, 1], [], []>} : vector<8x32xf32>, vector<32x32xf32>, vector<8x32xf32> -> vector<8x32xf32>
    %c0_12 = arith.constant 0 : index
    %c0_13 = arith.constant 0 : index
    %c0_14 = arith.constant 0 : index
    %16 = vector.load %arg8[%c0_12, %c0_13, %c0_14] : memref<3x1x32xf32, #tpu.memory_space<vmem>>, vector<1x1x32xf32>
    %17 = vector.shape_cast %16 : vector<1x1x32xf32> to vector<1x32xf32>
    %18 = vector.broadcast %17 : vector<1x32xf32> to vector<8x32xf32>
    %19 = arith.addf %15, %18 : vector<8x32xf32>
    %c1 = arith.constant 1 : index
    %c0_15 = arith.constant 0 : index
    %c0_16 = arith.constant 0 : index
    %20 = vector.load %arg7[%c1, %c0_15, %c0_16] : memref<3x32x32xf32, #tpu.memory_space<vmem>>, vector<1x32x32xf32>
    %21 = vector.shape_cast %20 : vector<1x32x32xf32> to vector<32x32xf32>
    %cst_17 = arith.constant dense<0.000000e+00> : vector<8x32xf32>
    %22 = tpu.matmul %4, %21, %cst_17 {dimension_numbers = #tpu.dot_dimension_numbers<[1], [0], [0], [1], [0, 0, 1, 1], [], []>} : vector<8x32xf32>, vector<32x32xf32>, vector<8x32xf32> -> vector<8x32xf32>
    %c1_18 = arith.constant 1 : index
    %c0_19 = arith.constant 0 : index
    %c0_20 = arith.constant 0 : index
    %23 = vector.load %arg8[%c1_18, %c0_19, %c0_20] : memref<3x1x32xf32, #tpu.memory_space<vmem>>, vector<1x1x32xf32>
    %24 = vector.shape_cast %23 : vector<1x1x32xf32> to vector<1x32xf32>
    %25 = vector.broadcast %24 : vector<1x32xf32> to vector<8x32xf32>
    %26 = arith.addf %22, %25 : vector<8x32xf32>
    %c2 = arith.constant 2 : index
    %c0_21 = arith.constant 0 : index
    %c0_22 = arith.constant 0 : index
    %27 = vector.load %arg7[%c2, %c0_21, %c0_22] : memref<3x32x32xf32, #tpu.memory_space<vmem>>, vector<1x32x32xf32>
    %28 = vector.shape_cast %27 : vector<1x32x32xf32> to vector<32x32xf32>
    %cst_23 = arith.constant dense<0.000000e+00> : vector<8x32xf32>
    %29 = tpu.matmul %4, %28, %cst_23 {dimension_numbers = #tpu.dot_dimension_numbers<[1], [0], [0], [1], [0, 0, 1, 1], [], []>} : vector<8x32xf32>, vector<32x32xf32>, vector<8x32xf32> -> vector<8x32xf32>
    %c2_24 = arith.constant 2 : index
    %c0_25 = arith.constant 0 : index
    %c0_26 = arith.constant 0 : index
    %30 = vector.load %arg8[%c2_24, %c0_25, %c0_26] : memref<3x1x32xf32, #tpu.memory_space<vmem>>, vector<1x1x32xf32>
    %31 = vector.shape_cast %30 : vector<1x1x32xf32> to vector<1x32xf32>
    %32 = vector.broadcast %31 : vector<1x32xf32> to vector<8x32xf32>
    %33 = arith.addf %29, %32 : vector<8x32xf32>
    %c0_27 = arith.constant 0 : index
    %c0_28 = arith.constant 0 : index
    %c0_29 = arith.constant 0 : index
    %34 = vector.load %arg5[%c0_27, %c0_28, %c0_29] : memref<3x32x32xf32, #tpu.memory_space<vmem>>, vector<1x32x32xf32>
    %35 = vector.shape_cast %34 : vector<1x32x32xf32> to vector<32x32xf32>
    %cst_30 = arith.constant dense<0.000000e+00> : vector<8x32xf32>
    %36 = tpu.matmul %11, %35, %cst_30 {dimension_numbers = #tpu.dot_dimension_numbers<[1], [0], [0], [1], [0, 0, 1, 1], [], []>} : vector<8x32xf32>, vector<32x32xf32>, vector<8x32xf32> -> vector<8x32xf32>
    %c0_31 = arith.constant 0 : index
    %c0_32 = arith.constant 0 : index
    %c0_33 = arith.constant 0 : index
    %37 = vector.load %arg6[%c0_31, %c0_32, %c0_33] : memref<3x1x32xf32, #tpu.memory_space<vmem>>, vector<1x1x32xf32>
    %38 = vector.shape_cast %37 : vector<1x1x32xf32> to vector<1x32xf32>
    %39 = vector.broadcast %38 : vector<1x32xf32> to vector<8x32xf32>
    %40 = arith.addf %36, %39 : vector<8x32xf32>
    %c1_34 = arith.constant 1 : index
    %c0_35 = arith.constant 0 : index
    %c0_36 = arith.constant 0 : index
    %41 = vector.load %arg5[%c1_34, %c0_35, %c0_36] : memref<3x32x32xf32, #tpu.memory_space<vmem>>, vector<1x32x32xf32>
    %42 = vector.shape_cast %41 : vector<1x32x32xf32> to vector<32x32xf32>
    %cst_37 = arith.constant dense<0.000000e+00> : vector<8x32xf32>
    %43 = tpu.matmul %11, %42, %cst_37 {dimension_numbers = #tpu.dot_dimension_numbers<[1], [0], [0], [1], [0, 0, 1, 1], [], []>} : vector<8x32xf32>, vector<32x32xf32>, vector<8x32xf32> -> vector<8x32xf32>
    %c1_38 = arith.constant 1 : index
    %c0_39 = arith.constant 0 : index
    %c0_40 = arith.constant 0 : index
    %44 = vector.load %arg6[%c1_38, %c0_39, %c0_40] : memref<3x1x32xf32, #tpu.memory_space<vmem>>, vector<1x1x32xf32>
    %45 = vector.shape_cast %44 : vector<1x1x32xf32> to vector<1x32xf32>
    %46 = vector.broadcast %45 : vector<1x32xf32> to vector<8x32xf32>
    %47 = arith.addf %43, %46 : vector<8x32xf32>
    %c2_41 = arith.constant 2 : index
    %c0_42 = arith.constant 0 : index
    %c0_43 = arith.constant 0 : index
    %48 = vector.load %arg5[%c2_41, %c0_42, %c0_43] : memref<3x32x32xf32, #tpu.memory_space<vmem>>, vector<1x32x32xf32>
    %49 = vector.shape_cast %48 : vector<1x32x32xf32> to vector<32x32xf32>
    %cst_44 = arith.constant dense<0.000000e+00> : vector<8x32xf32>
    %50 = tpu.matmul %11, %49, %cst_44 {dimension_numbers = #tpu.dot_dimension_numbers<[1], [0], [0], [1], [0, 0, 1, 1], [], []>} : vector<8x32xf32>, vector<32x32xf32>, vector<8x32xf32> -> vector<8x32xf32>
    %c2_45 = arith.constant 2 : index
    %c0_46 = arith.constant 0 : index
    %c0_47 = arith.constant 0 : index
    %51 = vector.load %arg6[%c2_45, %c0_46, %c0_47] : memref<3x1x32xf32, #tpu.memory_space<vmem>>, vector<1x1x32xf32>
    %52 = vector.shape_cast %51 : vector<1x1x32xf32> to vector<1x32xf32>
    %53 = vector.broadcast %52 : vector<1x32xf32> to vector<8x32xf32>
    %54 = arith.addf %50, %53 : vector<8x32xf32>
    %55 = arith.addf %40, %19 : vector<8x32xf32>
    %56 = arith.negf %55 : vector<8x32xf32>
    %57 = math.exp %56 : vector<8x32xf32>
    %cst_48 = arith.constant 1.000000e+00 : f32
    %58 = vector.broadcast %cst_48 : f32 to vector<8x32xf32>
    %59 = arith.addf %58, %57 : vector<8x32xf32>
    %60 = arith.divf %58, %59 : vector<8x32xf32>
    %61 = arith.addf %47, %26 : vector<8x32xf32>
    %62 = arith.negf %61 : vector<8x32xf32>
    %63 = math.exp %62 : vector<8x32xf32>
    %cst_49 = arith.constant 1.000000e+00 : f32
    %64 = vector.broadcast %cst_49 : f32 to vector<8x32xf32>
    %65 = arith.addf %64, %63 : vector<8x32xf32>
    %66 = arith.divf %64, %65 : vector<8x32xf32>
    %67 = arith.mulf %60, %33 : vector<8x32xf32>
    %68 = arith.addf %54, %67 : vector<8x32xf32>
    %69 = math.tanh %68 : vector<8x32xf32>
    %cst_50 = arith.constant 1.000000e+00 : f32
    %70 = vector.broadcast %cst_50 : f32 to vector<8x32xf32>
    %71 = arith.subf %70, %66 : vector<8x32xf32>
    %72 = arith.mulf %71, %69 : vector<8x32xf32>
    %73 = arith.mulf %66, %4 : vector<8x32xf32>
    %74 = arith.addf %72, %73 : vector<8x32xf32>
    %c0_51 = arith.constant 0 : index
    %c0_52 = arith.constant 0 : index
    %75 = vector.load %arg9[%c0_51, %c0_52] : memref<32x32xf32, #tpu.memory_space<vmem>>, vector<32x32xf32>
    %cst_53 = arith.constant dense<0.000000e+00> : vector<8x32xf32>
    %76 = tpu.matmul %74, %75, %cst_53 {dimension_numbers = #tpu.dot_dimension_numbers<[1], [0], [0], [1], [0, 0, 1, 1], [], []>} : vector<8x32xf32>, vector<32x32xf32>, vector<8x32xf32> -> vector<8x32xf32>
    %c0_54 = arith.constant 0 : index
    %c0_55 = arith.constant 0 : index
    %77 = vector.load %arg10[%c0_54, %c0_55] : memref<1x32xf32, #tpu.memory_space<vmem>>, vector<1x32xf32>
    %78 = vector.broadcast %77 : vector<1x32xf32> to vector<8x32xf32>
    %79 = arith.addf %76, %78 : vector<8x32xf32>
    %80 = math.tanh %79 : vector<8x32xf32>
    %c0_56 = arith.constant 0 : index
    %c0_57 = arith.constant 0 : index
    %81 = vector.load %arg11[%c0_56, %c0_57] : memref<32x8xf32, #tpu.memory_space<vmem>>, vector<32x8xf32>
    %cst_58 = arith.constant dense<0.000000e+00> : vector<8x8xf32>
    %82 = tpu.matmul %80, %81, %cst_58 {dimension_numbers = #tpu.dot_dimension_numbers<[1], [0], [0], [1], [0, 0, 1, 1], [], []>} : vector<8x32xf32>, vector<32x8xf32>, vector<8x8xf32> -> vector<8x8xf32>
    %c0_59 = arith.constant 0 : index
    %c0_60 = arith.constant 0 : index
    %83 = vector.load %arg12[%c0_59, %c0_60] : memref<1x8xf32, #tpu.memory_space<vmem>>, vector<1x8xf32>
    %84 = vector.broadcast %83 : vector<1x8xf32> to vector<8x8xf32>
    %85 = arith.addf %82, %84 : vector<8x8xf32>
    %86 = arith.mulf %12, %12 : vector<8x32xf32>
    %cst_61 = arith.constant 1.000000e+00 : f32
    %87 = vector.broadcast %cst_61 : f32 to vector<8x32xf32>
    %88 = arith.subf %87, %86 : vector<8x32xf32>
    %c0_62 = arith.constant 0 : index
    %c0_63 = arith.constant 0 : index
    %89 = vector.load %arg13[%c0_62, %c0_63] : memref<1x32xf32, #tpu.memory_space<vmem>>, vector<1x32xf32>
    %90 = vector.broadcast %89 : vector<1x32xf32> to vector<8x32xf32>
    %91 = arith.mulf %88, %90 : vector<8x32xf32>
    %c0_64 = arith.constant 0 : index
    %c0_65 = arith.constant 0 : index
    %92 = vector.load %arg14[%c0_64, %c0_65] : memref<32x8xf32, #tpu.memory_space<vmem>>, vector<32x8xf32>
    %cst_66 = arith.constant dense<0.000000e+00> : vector<8x8xf32>
    %93 = tpu.matmul %91, %92, %cst_66 {dimension_numbers = #tpu.dot_dimension_numbers<[1], [0], [0], [1], [0, 0, 1, 1], [], []>} : vector<8x32xf32>, vector<32x8xf32>, vector<8x8xf32> -> vector<8x8xf32>
    %94 = arith.addf %85, %93 : vector<8x8xf32>
    %cst_67 = arith.constant 1.000000e+00 : f32
    %95 = vector.broadcast %cst_67 : f32 to vector<8x8xf32>
    %96 = arith.mulf %95, %94 : vector<8x8xf32>
    %97 = arith.addf %3, %96 : vector<8x8xf32>
    %c0_68 = arith.constant 0 : index
    %c0_69 = arith.constant 0 : index
    %98 = vector.load %arg17[%c0_68, %c0_69] : memref<8x8xf32, #tpu.memory_space<vmem>>, vector<8x8xf32>
    tpu.vector_store %arg17[%c0_68, %c0_69], %97 {strides = array<i32>} : memref<8x8xf32, #tpu.memory_space<vmem>>, vector<8x8xf32>,
    %c0_70 = arith.constant 0 : index
    %c0_71 = arith.constant 0 : index
    %99 = vector.load %arg18[%c0_70, %c0_71] : memref<8x32xf32, #tpu.memory_space<vmem>>, vector<8x32xf32>
    tpu.vector_store %arg18[%c0_70, %c0_71], %74 {strides = array<i32>} : memref<8x32xf32, #tpu.memory_space<vmem>>, vector<8x32xf32>,
    %100 = arith.index_cast %arg0 : i32 to index
    %c0_72 = arith.constant 0 : index
    %c0_73 = arith.constant 0 : index
    %101 = vector.load %arg15[%100, %c0_72, %c0_73] : memref<8x8x8xf32, #tpu.memory_space<vmem>>, vector<1x8x8xf32>
    %102 = vector.shape_cast %101 : vector<1x8x8xf32> to vector<8x8xf32>
    %103 = vector.shape_cast %97 : vector<8x8xf32> to vector<1x8x8xf32>
    tpu.vector_store %arg15[%100, %c0_72, %c0_73], %103 {strides = array<i32>} : memref<8x8x8xf32, #tpu.memory_space<vmem>>, vector<1x8x8xf32>,
    %c0_74 = arith.constant 0 : index
    %c0_75 = arith.constant 0 : index
    %104 = vector.load %arg16[%c0_74, %c0_75] : memref<8x32xf32, #tpu.memory_space<vmem>>, vector<8x32xf32>
    tpu.vector_store %arg16[%c0_74, %c0_75], %74 {strides = array<i32>} : memref<8x32xf32, #tpu.memory_space<vmem>>, vector<8x32xf32>,
    return
  }
  func.func @transform_0(%arg0: i32) -> (i32, i32) {
    %c0_i32 = arith.constant 0 : i32
    %c0_i32_0 = arith.constant 0 : i32
    %c0_i32_1 = arith.constant 0 : i32
    return %c0_i32, %c0_i32_0 : i32, i32
  }
  func.func @transform_1(%arg0: i32) -> (i32, i32) {
    %c0_i32 = arith.constant 0 : i32
    %c0_i32_0 = arith.constant 0 : i32
    %c0_i32_1 = arith.constant 0 : i32
    return %c0_i32, %c0_i32_0 : i32, i32
  }
  func.func @transform_2(%arg0: i32) -> (i32, i32) {
    %c0_i32 = arith.constant 0 : i32
    %c0_i32_0 = arith.constant 0 : i32
    %c0_i32_1 = arith.constant 0 : i32
    return %c0_i32, %c0_i32_0 : i32, i32
  }
  func.func @transform_3(%arg0: i32) -> (i32, i32) {
    %c0_i32 = arith.constant 0 : i32
    %c0_i32_0 = arith.constant 0 : i32
    %c0_i32_1 = arith.constant 0 : i32
    return %c0_i32, %c0_i32_0 : i32, i32
  }
  func.func @transform_4(%arg0: i32) -> (i32, i32, i32) {
    %c0_i32 = arith.constant 0 : i32
    %c0_i32_0 = arith.constant 0 : i32
    %c0_i32_1 = arith.constant 0 : i32
    %c0_i32_2 = arith.constant 0 : i32
    return %c0_i32, %c0_i32_0, %c0_i32_1 : i32, i32, i32
  }
  func.func @transform_5(%arg0: i32) -> (i32, i32, i32) {
    %c0_i32 = arith.constant 0 : i32
    %c0_i32_0 = arith.constant 0 : i32
    %c0_i32_1 = arith.constant 0 : i32
    %c0_i32_2 = arith.constant 0 : i32
    return %c0_i32, %c0_i32_0, %c0_i32_1 : i32, i32, i32
  }
  func.func @transform_6(%arg0: i32) -> (i32, i32, i32) {
    %c0_i32 = arith.constant 0 : i32
    %c0_i32_0 = arith.constant 0 : i32
    %c0_i32_1 = arith.constant 0 : i32
    %c0_i32_2 = arith.constant 0 : i32
    return %c0_i32, %c0_i32_0, %c0_i32_1 : i32, i32, i32
  }
  func.func @transform_7(%arg0: i32) -> (i32, i32, i32) {
    %c0_i32 = arith.constant 0 : i32
    %c0_i32_0 = arith.constant 0 : i32
    %c0_i32_1 = arith.constant 0 : i32
    %c0_i32_2 = arith.constant 0 : i32
    return %c0_i32, %c0_i32_0, %c0_i32_1 : i32, i32, i32
  }
  func.func @transform_8(%arg0: i32) -> (i32, i32) {
    %c0_i32 = arith.constant 0 : i32
    %c0_i32_0 = arith.constant 0 : i32
    %c0_i32_1 = arith.constant 0 : i32
    return %c0_i32, %c0_i32_0 : i32, i32
  }
  func.func @transform_9(%arg0: i32) -> (i32, i32) {
    %c0_i32 = arith.constant 0 : i32
    %c0_i32_0 = arith.constant 0 : i32
    %c0_i32_1 = arith.constant 0 : i32
    return %c0_i32, %c0_i32_0 : i32, i32
  }
  func.func @transform_10(%arg0: i32) -> (i32, i32) {
    %c0_i32 = arith.constant 0 : i32
    %c0_i32_0 = arith.constant 0 : i32
    %c0_i32_1 = arith.constant 0 : i32
    return %c0_i32, %c0_i32_0 : i32, i32
  }
  func.func @transform_11(%arg0: i32) -> (i32, i32) {
    %c0_i32 = arith.constant 0 : i32
    %c0_i32_0 = arith.constant 0 : i32
    %c0_i32_1 = arith.constant 0 : i32
    return %c0_i32, %c0_i32_0 : i32, i32
  }
  func.func @transform_12(%arg0: i32) -> (i32, i32) {
    %c0_i32 = arith.constant 0 : i32
    %c0_i32_0 = arith.constant 0 : i32
    %c0_i32_1 = arith.constant 0 : i32
    return %c0_i32, %c0_i32_0 : i32, i32
  }
  func.func @transform_13(%arg0: i32) -> (i32, i32) {
    %c0_i32 = arith.constant 0 : i32
    %c0_i32_0 = arith.constant 0 : i32
    %c0_i32_1 = arith.constant 0 : i32
    return %c0_i32, %c0_i32_0 : i32, i32
  }
  func.func @transform_14(%arg0: i32) -> (i32, i32, i32) {
    %c0_i32 = arith.constant 0 : i32
    %c0_i32_0 = arith.constant 0 : i32
    %c0_i32_1 = arith.constant 0 : i32
    %c0_i32_2 = arith.constant 0 : i32
    return %c0_i32, %c0_i32_0, %c0_i32_1 : i32, i32, i32
  }
  func.func @transform_15(%arg0: i32) -> (i32, i32) {
    %c0_i32 = arith.constant 0 : i32
    %c0_i32_0 = arith.constant 0 : i32
    %c0_i32_1 = arith.constant 0 : i32
    return %c0_i32, %c0_i32_0 : i32, i32
  }
}

</mosaic_0001>

<llo_original>
// kernel: tpu_custom_call.1
$region0: #{tpu_custom_call.1}
  #allocation0 [shape = 'u32[]', space=smem, size = 0x4, offset = 0x4, fixed_abs, tag = 'smem constant byte address 0x4 - core index']
  #allocation1 [shape = 'u32[144,128]{1,0:T(1,128)}', space=vmem, size = 0x12000, scoped, tag = 'internal scratch']
  #allocation2 [shape = 'f32[8,8]{1,0:T(8,128)}', space=vmem, size = 0x1000, scoped, tag = 'scratch operand']
  #allocation3 [shape = 'f32[8,32]{1,0:T(8,128)}', space=vmem, size = 0x1000, scoped, tag = 'scratch operand']
  %s0 = inlined_call_operand.hbm [shape: f32[8,8], index: 0, kind: input, shape index: {}]
  %s1 = inlined_call_operand.hbm [shape: f32[8,32], index: 1, kind: input, shape index: {}]
  %s2 = inlined_call_operand.hbm [shape: f32[8,64], index: 2, kind: input, shape index: {}]
  %s3 = inlined_call_operand.vmem [shape: f32[1,64], index: 3, kind: input, shape index: {}]
  %s4 = inlined_call_operand.hbm [shape: f32[3,32,32], index: 4, kind: input, shape index: {}]
  %s5 = inlined_call_operand.hbm [shape: f32[3,1,32], index: 5, kind: input, shape index: {}]
  %s6 = inlined_call_operand.vmem [shape: f32[3,32,32], index: 6, kind: input, shape index: {}]
  %s7 = inlined_call_operand.hbm [shape: f32[3,1,32], index: 7, kind: input, shape index: {}]
  %s8 = inlined_call_operand.hbm [shape: f32[32,32], index: 8, kind: input, shape index: {}]
  %s9 = inlined_call_operand.vmem [shape: f32[1,32], index: 9, kind: input, shape index: {}]
  %s10 = inlined_call_operand.vmem [shape: f32[32,8], index: 10, kind: input, shape index: {}]
  %s11 = inlined_call_operand.vmem [shape: f32[1,8], index: 11, kind: input, shape index: {}]
  %s12 = inlined_call_operand.vmem [shape: f32[1,32], index: 12, kind: input, shape index: {}]
  %s13 = inlined_call_operand.vmem [shape: f32[32,8], index: 13, kind: input, shape index: {}]
  %s14 = inlined_call_operand.hbm [shape: f32[8,8,8], index: 14, kind: output, shape index: {0}]
  %s15 = inlined_call_operand.hbm [shape: f32[8,32], index: 15, kind: output, shape index: {1}]
  %16 = xla_tuple %s14, %s15
  %s17 = sld [smem:[#allocation0]]
  $region129: #{tpu_custom_call.1} parent=0
    _
  %s19 = ssub.s32 1, %s17
  %s20 = scalar_select 0, %s19, %s17
  $region1: #{tpu_custom_call.1} parent=0
    #allocation4 [shape = 'u8[4096]{0}', space=vmem, size = 0x1000, scoped, tag = 'input window, operand 0, single buffered']
    #allocation5 [shape = 's32[2]{0}', space=sflag, size = 0x8, scoped, tag = 'scoped memory for tpu_custom_call.1']
    #allocation6 [shape = 's32[2]{0}', space=sflag, size = 0x8, scoped, tag = 'scoped memory for tpu_custom_call.1']
    #allocation7 [shape = 'u8[4096]{0}', space=vmem, size = 0x1000, scoped, tag = 'input window, operand 1, single buffered']
    #allocation8 [shape = 's32[1]{0}', space=sflag, size = 0x4, scoped, tag = 'scoped memory for tpu_custom_call.1']
    #allocation9 [shape = 'u8[4096]{0}', space=vmem, size = 0x1000, scoped, tag = 'input window, operand 2, single buffered']
    #allocation10 [shape = 'u8[49152]{0}', space=vmem, size = 0xc000, scoped, tag = 'input window, operand 4, single buffered']
    #allocation11 [shape = 's32[1]{0}', space=sflag, size = 0x4, scoped, tag = 'scoped memory for tpu_custom_call.1']
    #allocation12 [shape = 'u8[1536]{0}', space=vmem, size = 0x800, scoped, tag = 'input window, operand 5, single buffered']
    #allocation13 [shape = 'u8[1536]{0}', space=vmem, size = 0x800, scoped, tag = 'input window, operand 7, single buffered']
    #allocation14 [shape = 's32[1]{0}', space=sflag, size = 0x4, scoped, tag = 'scoped memory for tpu_custom_call.1']
    #allocation15 [shape = 'u8[16384]{0}', space=vmem, size = 0x4000, scoped, tag = 'input window, operand 8, single buffered']
    #allocation16 [shape = 'u8[32768]{0}', space=vmem, size = 0x8000, scoped, tag = 'output window, operand 0, single buffered']
    #allocation17 [shape = 'u8[4096]{0}', space=vmem, size = 0x1000, scoped, tag = 'output window, operand 1, single buffered']
    #allocation18 [shape = 's32[1]{0}', space=sflag, size = 0x4, scoped, tag = 'scoped memory for tpu_custom_call.1']
    %21 = vsyncpa [#allocation5], 0
    %22 = vsyncpa [#allocation8], 0
    %23 = vsyncpa [#allocation11], 0
    %24 = vsyncpa [#allocation14], 0
    %25 = vsyncpa [#allocation6], 0
    %26 = vsyncpa [#allocation18], 0
    loop: start=0, step=1, limit=10
    $region2: #{tpu_custom_call.1} parent=1 // loop_pre_header
      _
    $region3: #{tpu_custom_call.1} parent=1 // loop_header
      %s28 = sphi 0, %s32
      %p29 = scmp.ge.s32.totalorder %s28, 10
      %s36 = sphi 0, %s36
      %s38 = sphi 0, %s36
      %s39 = sphi 0, %s38
      %s53 = sphi 0, %s39
      %s57 = sphi 0, %s57
      %s59 = sphi 0, %s57
      %s60 = sphi 0, %s59
      %s74 = sphi 0, %s60
      %s78 = sphi 0, %s78
      %s80 = sphi 0, %s78
      %s81 = sphi 0, %s80
      %s95 = sphi 0, %s81
      %s99 = sphi 0, %s99
      %s101 = sphi 0, %s99
      %s102 = sphi 0, %s101
      %s116 = sphi 0, %s102
      %s120 = sphi 0, %s120
      %s122 = sphi 0, %s120
      %s123 = sphi 0, %s122
      %s137 = sphi 0, %s123
      %s141 = sphi 0, %s141
      %s143 = sphi 0, %s141
      %s144 = sphi 0, %s143
      %s158 = sphi 0, %s144
      %s162 = sphi 0, %s162
      %s164 = sphi 0, %s162
      %s165 = sphi 0, %s164
      %s179 = sphi 0, %s165
      %s183 = sphi 0, %s183
      %s185 = sphi 0, %s183
      %s186 = sphi 0, %s185
      %s200 = sphi 0, %s186
      %s204 = sphi 0, %s204
      %s206 = sphi 0, %s204
      %s207 = sphi 0, %s206
      %s221 = sphi 0, %s207
      %s225 = sphi 0, %s225
      %s227 = sphi 0, %s225
      %s228 = sphi 0, %s227
      %s242 = sphi 0, %s228
      %s246 = sphi 0, %s246
      %s248 = sphi 0, %s246
      %s249 = sphi 0, %s248
      %s263 = sphi 0, %s249
      %s267 = sphi 0, %s267
      %s269 = sphi 0, %s267
      %s270 = sphi 0, %s269
      %s284 = sphi 0, %s270
      %s288 = sphi 0, %s288
      %s290 = sphi 0, %s288
      %s291 = sphi 0, %s290
      %s305 = sphi 0, %s291
      %s309 = sphi 0, %s309
      %s311 = sphi 0, %s309
      %s312 = sphi 0, %s311
      %s326 = sphi 0, %s312
      %s330 = sphi 0, %s330
      %s332 = sphi 0, %s330
      %s333 = sphi 0, %s332
      %s347 = sphi 0, %s333
      %s351 = sphi 0, %s351
      %s353 = sphi 0, %s351
      %s354 = sphi 0, %s353
      %s368 = sphi 0, %s354
    $region4: #{tpu_custom_call.1} parent=1 // loop_header_branch
      %31 = sbr.rel (%p29) target = $region8
    $region5: #{tpu_custom_call.1} parent=1 // loop_body
      %s33 = ssub.s32 %s28, 1
      %s34 = ssub.s32 %s28, 2
      %s35 = sadd.s32 %s28, 1
      %s37 = sadd.s32 %s36, 1
      %p40 = scmp.eq.s32.totalorder %s28, 7
      %p41 = scmp.ne.s32.totalorder %s36, %s38
      %p42 = scmp.eq.s32.totalorder %s28, 0
      %p43 = por %p41, %p42
      %p44 = scmp.ne.s32.totalorder %s36, %s38
      %p45 = scmp.eq.s32.totalorder %s33, 7
      %p46 = por %p44, %p45
      %p47 = scmp.ne.s32.totalorder %s38, %s39
      %p48 = scmp.eq.s32.totalorder %s33, 0
      %p49 = por %p47, %p48
      %p50 = scmp.ne.s32.totalorder %s38, %s39
      %p51 = scmp.eq.s32.totalorder %s34, 7
      %p52 = por %p50, %p51
      %p54 = scmp.ne.s32.totalorder %s39, %s53
      %p55 = scmp.eq.s32.totalorder %s34, 0
      %p56 = por %p54, %p55
      %s58 = sadd.s32 %s57, 1
      %p61 = scmp.eq.s32.totalorder %s28, 7
      %p62 = scmp.ne.s32.totalorder %s57, %s59
      %p63 = scmp.eq.s32.totalorder %s28, 0
      %p64 = por %p62, %p63
      %p65 = scmp.ne.s32.totalorder %s57, %s59
      %p66 = scmp.eq.s32.totalorder %s33, 7
      %p67 = por %p65, %p66
      %p68 = scmp.ne.s32.totalorder %s59, %s60
      %p69 = scmp.eq.s32.totalorder %s33, 0
      %p70 = por %p68, %p69
      %p71 = scmp.ne.s32.totalorder %s59, %s60
      %p72 = scmp.eq.s32.totalorder %s34, 7
      %p73 = por %p71, %p72
      %p75 = scmp.ne.s32.totalorder %s60, %s74
      %p76 = scmp.eq.s32.totalorder %s34, 0
      %p77 = por %p75, %p76
      %s79 = sadd.s32 %s78, 1
      %p82 = scmp.eq.s32.totalorder %s28, 7
      %p83 = scmp.ne.s32.totalorder %s78, %s80
      %p84 = scmp.eq.s32.totalorder %s28, 0
      %p85 = por %p83, %p84
      %p86 = scmp.ne.s32.totalorder %s78, %s80
      %p87 = scmp.eq.s32.totalorder %s33, 7
      %p88 = por %p86, %p87
      %p89 = scmp.ne.s32.totalorder %s80, %s81
      %p90 = scmp.eq.s32.totalorder %s33, 0
      %p91 = por %p89, %p90
      %p92 = scmp.ne.s32.totalorder %s80, %s81
      %p93 = scmp.eq.s32.totalorder %s34, 7
      %p94 = por %p92, %p93
      %p96 = scmp.ne.s32.totalorder %s81, %s95
      %p97 = scmp.eq.s32.totalorder %s34, 0
      %p98 = por %p96, %p97
      %s100 = sadd.s32 %s99, 1
      %p103 = scmp.eq.s32.totalorder %s28, 7
      %p104 = scmp.ne.s32.totalorder %s99, %s101
      %p105 = scmp.eq.s32.totalorder %s28, 0
      %p106 = por %p104, %p105
      %p107 = scmp.ne.s32.totalorder %s99, %s101
      %p108 = scmp.eq.s32.totalorder %s33, 7
      %p109 = por %p107, %p108
      %p110 = scmp.ne.s32.totalorder %s101, %s102
      %p111 = scmp.eq.s32.totalorder %s33, 0
      %p112 = por %p110, %p111
      %p113 = scmp.ne.s32.totalorder %s101, %s102
      %p114 = scmp.eq.s32.totalorder %s34, 7
      %p115 = por %p113, %p114
      %p117 = scmp.ne.s32.totalorder %s102, %s116
      %p118 = scmp.eq.s32.totalorder %s34, 0
      %p119 = por %p117, %p118
      %s121 = sadd.s32 %s120, 1
      %p124 = scmp.eq.s32.totalorder %s28, 7
      %p125 = scmp.ne.s32.totalorder %s120, %s122
      %p126 = scmp.eq.s32.totalorder %s28, 0
      %p127 = por %p125, %p126
      %p128 = scmp.ne.s32.totalorder %s120, %s122
      %p129 = scmp.eq.s32.totalorder %s33, 7
      %p130 = por %p128, %p129
      %p131 = scmp.ne.s32.totalorder %s122, %s123
      %p132 = scmp.eq.s32.totalorder %s33, 0
      %p133 = por %p131, %p132
      %p134 = scmp.ne.s32.totalorder %s122, %s123
      %p135 = scmp.eq.s32.totalorder %s34, 7
      %p136 = por %p134, %p135
      %p138 = scmp.ne.s32.totalorder %s123, %s137
      %p139 = scmp.eq.s32.totalorder %s34, 0
      %p140 = por %p138, %p139
      %s142 = sadd.s32 %s141, 1
      %p145 = scmp.eq.s32.totalorder %s28, 7
      %p146 = scmp.ne.s32.totalorder %s141, %s143
      %p147 = scmp.eq.s32.totalorder %s28, 0
      %p148 = por %p146, %p147
      %p149 = scmp.ne.s32.totalorder %s141, %s143
      %p150 = scmp.eq.s32.totalorder %s33, 7
      %p151 = por %p149, %p150
      %p152 = scmp.ne.s32.totalorder %s143, %s144
      %p153 = scmp.eq.s32.totalorder %s33, 0
      %p154 = por %p152, %p153
      %p155 = scmp.ne.s32.totalorder %s143, %s144
      %p156 = scmp.eq.s32.totalorder %s34, 7
      %p157 = por %p155, %p156
      %p159 = scmp.ne.s32.totalorder %s144, %s158
      %p160 = scmp.eq.s32.totalorder %s34, 0
      %p161 = por %p159, %p160
      %s163 = sadd.s32 %s162, 1
      %p166 = scmp.eq.s32.totalorder %s28, 7
      %p167 = scmp.ne.s32.totalorder %s162, %s164
      %p168 = scmp.eq.s32.totalorder %s28, 0
      %p169 = por %p167, %p168
      %p170 = scmp.ne.s32.totalorder %s162, %s164
      %p171 = scmp.eq.s32.totalorder %s33, 7
      %p172 = por %p170, %p171
      %p173 = scmp.ne.s32.totalorder %s164, %s165
      %p174 = scmp.eq.s32.totalorder %s33, 0
      %p175 = por %p173, %p174
      %p176 = scmp.ne.s32.totalorder %s164, %s165
      %p177 = scmp.eq.s32.totalorder %s34, 7
      %p178 = por %p176, %p177
      %p180 = scmp.ne.s32.totalorder %s165, %s179
      %p181 = scmp.eq.s32.totalorder %s34, 0
      %p182 = por %p180, %p181
      %s184 = sadd.s32 %s183, 1
      %p187 = scmp.eq.s32.totalorder %s28, 7
      %p188 = scmp.ne.s32.totalorder %s183, %s185
      %p189 = scmp.eq.s32.totalorder %s28, 0
      %p190 = por %p188, %p189
      %p191 = scmp.ne.s32.totalorder %s183, %s185
      %p192 = scmp.eq.s32.totalorder %s33, 7
      %p193 = por %p191, %p192
      %p194 = scmp.ne.s32.totalorder %s185, %s186
      %p195 = scmp.eq.s32.totalorder %s33, 0
      %p196 = por %p194, %p195
      %p197 = scmp.ne.s32.totalorder %s185, %s186
      %p198 = scmp.eq.s32.totalorder %s34, 7
      %p199 = por %p197, %p198
      %p201 = scmp.ne.s32.totalorder %s186, %s200
      %p202 = scmp.eq.s32.totalorder %s34, 0
      %p203 = por %p201, %p202
      %s205 = sadd.s32 %s204, 1
      %p208 = scmp.eq.s32.totalorder %s28, 7
      %p209 = scmp.ne.s32.totalorder %s204, %s206
      %p210 = scmp.eq.s32.totalorder %s28, 0
      %p211 = por %p209, %p210
      %p212 = scmp.ne.s32.totalorder %s204, %s206
      %p213 = scmp.eq.s32.totalorder %s33, 7
      %p214 = por %p212, %p213
      %p215 = scmp.ne.s32.totalorder %s206, %s207
      %p216 = scmp.eq.s32.totalorder %s33, 0
      %p217 = por %p215, %p216
      %p218 = scmp.ne.s32.totalorder %s206, %s207
      %p219 = scmp.eq.s32.totalorder %s34, 7
      %p220 = por %p218, %p219
      %p222 = scmp.ne.s32.totalorder %s207, %s221
      %p223 = scmp.eq.s32.totalorder %s34, 0
      %p224 = por %p222, %p223
      %s226 = sadd.s32 %s225, 1
      %p229 = scmp.eq.s32.totalorder %s28, 7
      %p230 = scmp.ne.s32.totalorder %s225, %s227
      %p231 = scmp.eq.s32.totalorder %s28, 0
      %p232 = por %p230, %p231
      %p233 = scmp.ne.s32.totalorder %s225, %s227
      %p234 = scmp.eq.s32.totalorder %s33, 7
      %p235 = por %p233, %p234
      %p236 = scmp.ne.s32.totalorder %s227, %s228
      %p237 = scmp.eq.s32.totalorder %s33, 0
      %p238 = por %p236, %p237
      %p239 = scmp.ne.s32.totalorder %s227, %s228
      %p240 = scmp.eq.s32.totalorder %s34, 7
      %p241 = por %p239, %p240
      %p243 = scmp.ne.s32.totalorder %s228, %s242
      %p244 = scmp.eq.s32.totalorder %s34, 0
      %p245 = por %p243, %p244
      %s247 = sadd.s32 %s246, 1
      %p250 = scmp.eq.s32.totalorder %s28, 7
      %p251 = scmp.ne.s32.totalorder %s246, %s248
      %p252 = scmp.eq.s32.totalorder %s28, 0
      %p253 = por %p251, %p252
      %p254 = scmp.ne.s32.totalorder %s246, %s248
      %p255 = scmp.eq.s32.totalorder %s33, 7
      %p256 = por %p254, %p255
      %p257 = scmp.ne.s32.totalorder %s248, %s249
      %p258 = scmp.eq.s32.totalorder %s33, 0
      %p259 = por %p257, %p258
      %p260 = scmp.ne.s32.totalorder %s248, %s249
      %p261 = scmp.eq.s32.totalorder %s34, 7
      %p262 = por %p260, %p261
      %p264 = scmp.ne.s32.totalorder %s249, %s263
      %p265 = scmp.eq.s32.totalorder %s34, 0
      %p266 = por %p264, %p265
      %s268 = sadd.s32 %s267, 1
      %p271 = scmp.eq.s32.totalorder %s28, 7
      %p272 = scmp.ne.s32.totalorder %s267, %s269
      %p273 = scmp.eq.s32.totalorder %s28, 0
      %p274 = por %p272, %p273
      %p275 = scmp.ne.s32.totalorder %s267, %s269
      %p276 = scmp.eq.s32.totalorder %s33, 7
      %p277 = por %p275, %p276
      %p278 = scmp.ne.s32.totalorder %s269, %s270
      %p279 = scmp.eq.s32.totalorder %s33, 0
      %p280 = por %p278, %p279
      %p281 = scmp.ne.s32.totalorder %s269, %s270
      %p282 = scmp.eq.s32.totalorder %s34, 7
      %p283 = por %p281, %p282
      %p285 = scmp.ne.s32.totalorder %s270, %s284
      %p286 = scmp.eq.s32.totalorder %s34, 0
      %p287 = por %p285, %p286
      %s289 = sadd.s32 %s288, 1
      %p292 = scmp.eq.s32.totalorder %s28, 7
      %p293 = scmp.ne.s32.totalorder %s288, %s290
      %p294 = scmp.eq.s32.totalorder %s28, 0
      %p295 = por %p293, %p294
      %p296 = scmp.ne.s32.totalorder %s288, %s290
      %p297 = scmp.eq.s32.totalorder %s33, 7
      %p298 = por %p296, %p297
      %p299 = scmp.ne.s32.totalorder %s290, %s291
      %p300 = scmp.eq.s32.totalorder %s33, 0
      %p301 = por %p299, %p300
      %p302 = scmp.ne.s32.totalorder %s290, %s291
      %p303 = scmp.eq.s32.totalorder %s34, 7
      %p304 = por %p302, %p303
      %p306 = scmp.ne.s32.totalorder %s291, %s305
      %p307 = scmp.eq.s32.totalorder %s34, 0
      %p308 = por %p306, %p307
      %s310 = sadd.s32 %s309, 1
      %p313 = scmp.eq.s32.totalorder %s28, 7
      %p314 = scmp.ne.s32.totalorder %s309, %s311
      %p315 = scmp.eq.s32.totalorder %s28, 0
      %p316 = por %p314, %p315
      %p317 = scmp.ne.s32.totalorder %s309, %s311
      %p318 = scmp.eq.s32.totalorder %s33, 7
      %p319 = por %p317, %p318
      %p320 = scmp.ne.s32.totalorder %s311, %s312
      %p321 = scmp.eq.s32.totalorder %s33, 0
      %p322 = por %p320, %p321
      %p323 = scmp.ne.s32.totalorder %s311, %s312
      %p324 = scmp.eq.s32.totalorder %s34, 7
      %p325 = por %p323, %p324
      %p327 = scmp.ne.s32.totalorder %s312, %s326
      %p328 = scmp.eq.s32.totalorder %s34, 0
      %p329 = por %p327, %p328
      %s331 = sadd.s32 %s330, 1
      %p334 = scmp.eq.s32.totalorder %s28, 7
      %p335 = scmp.ne.s32.totalorder %s330, %s332
      %p336 = scmp.eq.s32.totalorder %s28, 0
      %p337 = por %p335, %p336
      %p338 = scmp.ne.s32.totalorder %s330, %s332
      %p339 = scmp.eq.s32.totalorder %s33, 7
      %p340 = por %p338, %p339
      %p341 = scmp.ne.s32.totalorder %s332, %s333
      %p342 = scmp.eq.s32.totalorder %s33, 0
      %p343 = por %p341, %p342
      %p344 = scmp.ne.s32.totalorder %s332, %s333
      %p345 = scmp.eq.s32.totalorder %s34, 7
      %p346 = por %p344, %p345
      %p348 = scmp.ne.s32.totalorder %s333, %s347
      %p349 = scmp.eq.s32.totalorder %s34, 0
      %p350 = por %p348, %p349
      %s352 = sadd.s32 %s351, 1
      %p355 = scmp.eq.s32.totalorder %s28, 7
      %p356 = scmp.ne.s32.totalorder %s351, %s353
      %p357 = scmp.eq.s32.totalorder %s28, 0
      %p358 = por %p356, %p357
      %p359 = scmp.ne.s32.totalorder %s351, %s353
      %p360 = scmp.eq.s32.totalorder %s33, 7
      %p361 = por %p359, %p360
      %p362 = scmp.ne.s32.totalorder %s353, %s354
      %p363 = scmp.eq.s32.totalorder %s33, 0
      %p364 = por %p362, %p363
      %p365 = scmp.ne.s32.totalorder %s353, %s354
      %p366 = scmp.eq.s32.totalorder %s34, 7
      %p367 = por %p365, %p366
      %p369 = scmp.ne.s32.totalorder %s354, %s368
      %p370 = scmp.eq.s32.totalorder %s34, 0
      %p371 = por %p369, %p370
      %p372 = scmp.le.s32.totalorder 1, %s28
      %p373 = scmp.lt.s32.totalorder %s28, 9
      %p374 = pnand %p372, %p373
      %p375 = pneg %p374
      // Predicated region
      $region9: #{tpu_custom_call.1} parent=5 // pred_check
        _
      $region10: #{tpu_custom_call.1} parent=5 // pred_check_branch
        %377 = sbr.rel (%p374) target = $region12
      $region11: #{tpu_custom_call.1} parent=5 // pred_region
        %s378 = ssub.s32 %s28, 1
        // Predicated region
        $region13: #{tpu_custom_call.1} parent=11 // pred_check
          %p379 = pneg %p49
        $region14: #{tpu_custom_call.1} parent=11 // pred_check_branch
          %381 = sbr.rel (%p379) target = $region16
        $region15: #{tpu_custom_call.1} parent=11 // pred_region
          %s383 = ssub.s32 128, 128
          %384 = vsyncadd [#allocation5], %s383
          %s386 = sshll.u32 [#allocation4], 4
          %s387 = int_to_ptr.vmem [resolvable:$true] %s386
          %389 = dma.hbm_to_vmem [thread:$0]  %s0, 128, %s387, [#allocation5]
        $region16: #{tpu_custom_call.1} parent=11 // pred_fallthru
          _
        // Predicated region
        $region17: #{tpu_custom_call.1} parent=11 // pred_check
          %p390 = pneg %p70
        $region18: #{tpu_custom_call.1} parent=11 // pred_check_branch
          %392 = sbr.rel (%p390) target = $region20
        $region19: #{tpu_custom_call.1} parent=11 // pred_region
          %s394 = ssub.s32 128, 128
          %395 = vsyncadd [#allocation8], %s394
          %s397 = sshll.u32 [#allocation7], 4
          %s398 = int_to_ptr.vmem [resolvable:$true] %s397
          %400 = dma.hbm_to_vmem [thread:$0]  %s1, 128, %s398, [#allocation8]
        $region20: #{tpu_custom_call.1} parent=11 // pred_fallthru
          _
        // Predicated region
        $region21: #{tpu_custom_call.1} parent=11 // pred_check
          %p401 = pneg %p91
        $region22: #{tpu_custom_call.1} parent=11 // pred_check_branch
          %403 = sbr.rel (%p401) target = $region24
        $region23: #{tpu_custom_call.1} parent=11 // pred_region
          %s405 = ssub.s32 128, 128
          %406 = vsyncadd [#allocation8], %s405
          %s408 = sshll.u32 [#allocation9], 4
          %s409 = int_to_ptr.vmem [resolvable:$true] %s408
          %411 = dma.hbm_to_vmem [thread:$0]  %s2, 128, %s409, [#allocation8]
        $region24: #{tpu_custom_call.1} parent=11 // pred_fallthru
          _
        // Predicated region
        $region25: #{tpu_custom_call.1} parent=11 // pred_check
          %p412 = pneg %p112
        $region26: #{tpu_custom_call.1} parent=11 // pred_check_branch
          %414 = sbr.rel (%p412) target = $region28
        $region27: #{tpu_custom_call.1} parent=11 // pred_region
          _
        $region28: #{tpu_custom_call.1} parent=11 // pred_fallthru
          _
        // Predicated region
        $region29: #{tpu_custom_call.1} parent=11 // pred_check
          %p415 = pneg %p133
        $region30: #{tpu_custom_call.1} parent=11 // pred_check_branch
          %417 = sbr.rel (%p415) target = $region32
        $region31: #{tpu_custom_call.1} parent=11 // pred_region
          %s419 = ssub.s32 1536, 1536
          %420 = vsyncadd [#allocation11], %s419
          %s421 = sshll.u32 [#allocation10], 4
          %s422 = int_to_ptr.vmem [resolvable:$true] %s421
          %427 = dma.hbm_to_vmem [thread:$0]  %s4, 1536, %s422, [#allocation11], 128, 128, 8
        $region32: #{tpu_custom_call.1} parent=11 // pred_fallthru
          _
        // Predicated region
        $region33: #{tpu_custom_call.1} parent=11 // pred_check
          %p428 = pneg %p154
        $region34: #{tpu_custom_call.1} parent=11 // pred_check_branch
          %430 = sbr.rel (%p428) target = $region36
        $region35: #{tpu_custom_call.1} parent=11 // pred_region
          %s432 = ssub.s32 48, 48
          %433 = vsyncadd [#allocation11], %s432
          %s434 = sshll.u32 [#allocation12], 4
          %s435 = int_to_ptr.vmem [resolvable:$true] %s434
          %440 = dma.hbm_to_vmem [thread:$0]  %s5, 48, %s435, [#allocation11], 16, 16, 1
        $region36: #{tpu_custom_call.1} parent=11 // pred_fallthru
          _
        // Predicated region
        $region37: #{tpu_custom_call.1} parent=11 // pred_check
          %p441 = pneg %p175
        $region38: #{tpu_custom_call.1} parent=11 // pred_check_branch
          %443 = sbr.rel (%p441) target = $region40
        $region39: #{tpu_custom_call.1} parent=11 // pred_region
          _
        $region40: #{tpu_custom_call.1} parent=11 // pred_fallthru
          _
        // Predicated region
        $region41: #{tpu_custom_call.1} parent=11 // pred_check
          %p444 = pneg %p196
        $region42: #{tpu_custom_call.1} parent=11 // pred_check_branch
          %446 = sbr.rel (%p444) target = $region44
        $region43: #{tpu_custom_call.1} parent=11 // pred_region
          %s448 = ssub.s32 48, 48
          %449 = vsyncadd [#allocation14], %s448
          %s450 = sshll.u32 [#allocation13], 4
          %s451 = int_to_ptr.vmem [resolvable:$true] %s450
          %456 = dma.hbm_to_vmem [thread:$0]  %s7, 48, %s451, [#allocation14], 16, 16, 1
        $region44: #{tpu_custom_call.1} parent=11 // pred_fallthru
          _
        // Predicated region
        $region45: #{tpu_custom_call.1} parent=11 // pred_check
          %p457 = pneg %p217
        $region46: #{tpu_custom_call.1} parent=11 // pred_check_branch
          %459 = sbr.rel (%p457) target = $region48
        $region47: #{tpu_custom_call.1} parent=11 // pred_region
          %s461 = ssub.s32 512, 512
          %462 = vsyncadd [#allocation14], %s461
          %s463 = sshll.u32 [#allocation15], 4
          %s464 = int_to_ptr.vmem [resolvable:$true] %s463
          %469 = dma.hbm_to_vmem [thread:$0]  %s8, 512, %s464, [#allocation14], 128, 128, 8
        $region48: #{tpu_custom_call.1} parent=11 // pred_fallthru
          _
        // Predicated region
        $region49: #{tpu_custom_call.1} parent=11 // pred_check
          %p470 = pneg %p238
        $region50: #{tpu_custom_call.1} parent=11 // pred_check_branch
          %472 = sbr.rel (%p470) target = $region52
        $region51: #{tpu_custom_call.1} parent=11 // pred_region
          _
        $region52: #{tpu_custom_call.1} parent=11 // pred_fallthru
          _
        // Predicated region
        $region53: #{tpu_custom_call.1} parent=11 // pred_check
          %p473 = pneg %p259
        $region54: #{tpu_custom_call.1} parent=11 // pred_check_branch
          %475 = sbr.rel (%p473) target = $region56
        $region55: #{tpu_custom_call.1} parent=11 // pred_region
          _
        $region56: #{tpu_custom_call.1} parent=11 // pred_fallthru
          _
        // Predicated region
        $region57: #{tpu_custom_call.1} parent=11 // pred_check
          %p476 = pneg %p280
        $region58: #{tpu_custom_call.1} parent=11 // pred_check_branch
          %478 = sbr.rel (%p476) target = $region60
        $region59: #{tpu_custom_call.1} parent=11 // pred_region
          _
        $region60: #{tpu_custom_call.1} parent=11 // pred_fallthru
          _
        // Predicated region
        $region61: #{tpu_custom_call.1} parent=11 // pred_check
          %p479 = pneg %p301
        $region62: #{tpu_custom_call.1} parent=11 // pred_check_branch
          %481 = sbr.rel (%p479) target = $region64
        $region63: #{tpu_custom_call.1} parent=11 // pred_region
          _
        $region64: #{tpu_custom_call.1} parent=11 // pred_fallthru
          _
        // Predicated region
        $region65: #{tpu_custom_call.1} parent=11 // pred_check
          %p482 = pneg %p322
        $region66: #{tpu_custom_call.1} parent=11 // pred_check_branch
          %484 = sbr.rel (%p482) target = $region68
        $region67: #{tpu_custom_call.1} parent=11 // pred_region
          _
        $region68: #{tpu_custom_call.1} parent=11 // pred_fallthru
          _
      $region12: #{tpu_custom_call.1} parent=5 // pred_fallthru
        _
      %p485 = scmp.lt.s32.totalorder %s28, 8
      // Predicated region
      $region69: #{tpu_custom_call.1} parent=5 // pred_check
        %p486 = pneg %p485
      $region70: #{tpu_custom_call.1} parent=5 // pred_check_branch
        %488 = sbr.rel (%p486) target = $region72
      $region71: #{tpu_custom_call.1} parent=5 // pred_region
        _
      $region72: #{tpu_custom_call.1} parent=5 // pred_fallthru
        _
      %p489 = scmp.le.s32.totalorder 1, %s28
      %p490 = scmp.lt.s32.totalorder %s28, 9
      %p491 = pnand %p489, %p490
      %p492 = pneg %p491
      // Predicated region
      $region73: #{tpu_custom_call.1} parent=5 // pred_check
        _
      $region74: #{tpu_custom_call.1} parent=5 // pred_check_branch
        %494 = sbr.rel (%p491) target = $region76
      $region75: #{tpu_custom_call.1} parent=5 // pred_region
        %s495 = ssub.s32 %s28, 1
        // Predicated region
        $region77: #{tpu_custom_call.1} parent=75 // pred_check
          %p496 = pneg %p49
        $region78: #{tpu_custom_call.1} parent=75 // pred_check_branch
          %498 = sbr.rel (%p496) target = $region80
        $region79: #{tpu_custom_call.1} parent=75 // pred_region
          %499 = dma.done [#allocation5], 128
        $region80: #{tpu_custom_call.1} parent=75 // pred_fallthru
          _
        // Predicated region
        $region81: #{tpu_custom_call.1} parent=75 // pred_check
          %p500 = pneg %p70
        $region82: #{tpu_custom_call.1} parent=75 // pred_check_branch
          %502 = sbr.rel (%p500) target = $region84
        $region83: #{tpu_custom_call.1} parent=75 // pred_region
          %503 = dma.done [#allocation8], 128
        $region84: #{tpu_custom_call.1} parent=75 // pred_fallthru
          _
        // Predicated region
        $region85: #{tpu_custom_call.1} parent=75 // pred_check
          %p504 = pneg %p91
        $region86: #{tpu_custom_call.1} parent=75 // pred_check_branch
          %506 = sbr.rel (%p504) target = $region88
        $region87: #{tpu_custom_call.1} parent=75 // pred_region
          %507 = dma.done [#allocation8], 128
        $region88: #{tpu_custom_call.1} parent=75 // pred_fallthru
          _
        // Predicated region
        $region89: #{tpu_custom_call.1} parent=75 // pred_check
          %p508 = pneg %p133
        $region90: #{tpu_custom_call.1} parent=75 // pred_check_branch
          %510 = sbr.rel (%p508) target = $region92
        $region91: #{tpu_custom_call.1} parent=75 // pred_region
          %511 = dma.done [#allocation11], 1536
        $region92: #{tpu_custom_call.1} parent=75 // pred_fallthru
          _
        // Predicated region
        $region93: #{tpu_custom_call.1} parent=75 // pred_check
          %p512 = pneg %p154
        $region94: #{tpu_custom_call.1} parent=75 // pred_check_branch
          %514 = sbr.rel (%p512) target = $region96
        $region95: #{tpu_custom_call.1} parent=75 // pred_region
          %515 = dma.done [#allocation11], 48
        $region96: #{tpu_custom_call.1} parent=75 // pred_fallthru
          _
        // Predicated region
        $region97: #{tpu_custom_call.1} parent=75 // pred_check
          %p516 = pneg %p196
        $region98: #{tpu_custom_call.1} parent=75 // pred_check_branch
          %518 = sbr.rel (%p516) target = $region100
        $region99: #{tpu_custom_call.1} parent=75 // pred_region
          %519 = dma.done [#allocation14], 48
        $region100: #{tpu_custom_call.1} parent=75 // pred_fallthru
          _
        // Predicated region
        $region101: #{tpu_custom_call.1} parent=75 // pred_check
          %p520 = pneg %p217
        $region102: #{tpu_custom_call.1} parent=75 // pred_check_branch
          %522 = sbr.rel (%p520) target = $region104
        $region103: #{tpu_custom_call.1} parent=75 // pred_region
          %523 = dma.done [#allocation14], 512
        $region104: #{tpu_custom_call.1} parent=75 // pred_fallthru
          _
        %p524 = pneg %p49
        %p525 = pneg %p46
        %p526 = pneg %p70
        %p527 = pneg %p67
        %p528 = pneg %p91
        %p529 = pneg %p88
        %p530 = pneg %p112
        %p531 = pneg %p109
        %p532 = pneg %p133
        %p533 = pneg %p130
        %p534 = pneg %p154
        %p535 = pneg %p151
        %p536 = pneg %p175
        %p537 = pneg %p172
        %p538 = pneg %p196
        %p539 = pneg %p193
        %p540 = pneg %p217
        %p541 = pneg %p214
        %p542 = pneg %p238
        %p543 = pneg %p235
        %p544 = pneg %p259
        %p545 = pneg %p256
        %p546 = pneg %p280
        %p547 = pneg %p277
        %p548 = pneg %p301
        %p549 = pneg %p298
        %p550 = pneg %p322
        %p551 = pneg %p319
        %p552 = pneg %p343
        %p553 = pneg %p340
        %p554 = pneg %p364
        %p555 = pneg %p361
        %p556 = scmp.eq.s32.totalorder %s33, 0
        // Predicated region
        $region105: #{tpu_custom_call.1} parent=75 // pred_check
          %p557 = pneg %p556
        $region106: #{tpu_custom_call.1} parent=75 // pred_check_branch
          %559 = sbr.rel (%p557) target = $region108
        $region107: #{tpu_custom_call.1} parent=75 // pred_region
          %v560 = vld [vmem:[#allocation4] sm:$0xff]
          %vm561 = vcmask 64512
          %562 = vst.msk [vmem:[#allocation2] sm:$0xff] %vm561, %v560
          %v563 = vld [vmem:[#allocation7] sm:$0xff]
          %vm564 = vcmask 261120
          %565 = vst.msk [vmem:[#allocation3] sm:$0xff] %vm564, %v563
        $region108: #{tpu_custom_call.1} parent=75 // pred_fallthru
          _
        %v566 = vld [vmem:[#allocation2] sm:$0xff]
        %v567 = vld [vmem:[#allocation3] sm:$0xff]
        %v568 = vld [vmem:[#allocation9] sm:$0xff]
        %v569 = vld [vmem:[%s3] sm:$0x1]
        %v571 = vlaneseq
        %v572 = vshrl.u32 %v571, 7
        %v573 = vsub.s32 0, %v572
        %v574 = vrot.slane %v569, %v573
        %vm576 = vcmask 64512
        %v578 = vsel %vm576, %v566, 0
        %580 = vmatprep.subr.mxu0 0.0
        %581 = vmatpush1.msra.mxu0 %v568
        %582 = vmatprep.subr.mxu0 0.0
        %583 = vmatpush1.msra.mxu0 0.0
        %584 = vmatprep.subr.mxu0 0.0
        %585 = vmatpush1.msra.mxu0 0.0
        %586 = vmatprep.subr.mxu0 0.0
        %587 = vmatpush1.msra.mxu0 0.0
        %588 = vmatprep.subr.mxu0 0.0
        %589 = vmatpush1.msra.mxu0 0.0
        %590 = vmatprep.subr.mxu0 0.0
        %591 = vmatpush1.msra.mxu0 0.0
        %592 = vmatprep.subr.mxu0 0.0
        %593 = vmatpush1.msra.mxu0 0.0
        %594 = vmatprep.subr.mxu0 0.0
        %595 = vmatpush1.msra.mxu0 0.0
        %596 = vmatprep.subr.mxu0 0.0
        %597 = vmatpush1.msra.mxu0 0.0
        %598 = vmatprep.subr.mxu0 0.0
        %599 = vmatpush1.msra.mxu0 0.0
        %600 = vmatprep.subr.mxu0 0.0
        %601 = vmatpush1.msra.mxu0 0.0
        %602 = vmatprep.subr.mxu0 0.0
        %603 = vmatpush1.msra.mxu0 0.0
        %604 = vmatprep.subr.mxu0 0.0
        %605 = vmatpush1.msra.mxu0 0.0
        %606 = vmatprep.subr.mxu0 0.0
        %607 = vmatpush1.msra.mxu0 0.0
        %608 = vmatprep.subr.mxu0 0.0
        %609 = vmatpush1.msra.mxu0 0.0
        %610 = vmatprep.subr.mxu0 0.0
        %611 = vmatpush1.msra.mxu0 0.0
        %612 = vmatprep.subr.mxu0 0.0
        %613 = vmatpush1.msra.mxu0 0.0
        %614 = vmatprep.subr.mxu0 0.0
        %615 = vmatpush1.msra.mxu0 0.0
        %616 = vmatprep.subr.mxu0 0.0
        %617 = vmatpush1.msra.mxu0 0.0
        %618 = vmatprep.subr.mxu0 0.0
        %619 = vmatpush1.msra.mxu0 0.0
        %620 = vmatprep.subr.mxu0 0.0
        %621 = vmatpush1.msra.mxu0 0.0
        %622 = vmatprep.subr.mxu0 0.0
        %623 = vmatpush1.msra.mxu0 0.0
        %624 = vmatprep.subr.mxu0 0.0
        %625 = vmatpush1.msra.mxu0 0.0
        %626 = vmatprep.subr.mxu0 0.0
        %627 = vmatpush1.msra.mxu0 0.0
        %628 = vmatprep.subr.mxu0 0.0
        %629 = vmatpush1.msra.mxu0 0.0
        %630 = vmatprep.subr.mxu0 0.0
        %631 = vmatpush1.msra.mxu0 0.0
        %632 = vmatprep.subr.mxu0 0.0
        %633 = vmatpush1.msra.mxu0 0.0
        %634 = vmatprep.subr.mxu0 0.0
        %635 = vmatpush1.msra.mxu0 0.0
        %636 = vmatprep.subr.mxu0 0.0
        %637 = vmatpush1.msra.mxu0 0.0
        %638 = vmatprep.subr.mxu0 0.0
        %639 = vmatpush1.msra.mxu0 0.0
        %640 = vmatprep.subr.mxu0 0.0
        %641 = vmatpush1.msra.mxu0 0.0
        %642 = vmatprep.subr.mxu0 0.0
        %643 = vmatpush1.msra.mxu0 0.0
        %644 = vmatprep.mubr.f32.mxu0 0.0
        %645 = vmatmul.mubr.f32.gmra.mrb[0].mxu0 %v578
        %v646 = vpop.f32.mrb[0].mxu0
        %v647 = vadd.f32 %v574, %v646
        %v648 = vpop.f32.mrb[0].mxu0
        %649 = vdwg.mxu0
        %v650 = vtanh.pop %v647
        %v651 = vld [vmem:[%s6] sm:$0xff]
        %v652 = vld [vmem:[%s6 + $0x8] sm:$0xff]
        %v653 = vld [vmem:[%s6 + $0x10] sm:$0xff]
        %v654 = vld [vmem:[%s6 + $0x18] sm:$0xff]
        %v655 = vld [vmem:[#allocation13] sm:$0x1]
        %v657 = vlaneseq
        %v658 = vshrl.u32 %v657, 7
        %v659 = vsub.s32 0, %v658
        %v660 = vrot.slane %v655, %v659
        %vm662 = vcmask 261120
        %v664 = vsel %vm662, %v567, 0
        %666 = vmatprep.subr.mxu0 0.0
        %667 = vmatpush1.msra.mxu0 %v651
        %668 = vmatprep.subr.mxu0 0.0
        %669 = vmatpush1.msra.mxu0 %v652
        %670 = vmatprep.subr.mxu0 0.0
        %671 = vmatpush1.msra.mxu0 %v653
        %672 = vmatprep.subr.mxu0 0.0
        %673 = vmatpush1.msra.mxu0 %v654
        %674 = vmatprep.subr.mxu0 0.0
        %675 = vmatpush1.msra.mxu0 0.0
        %676 = vmatprep.subr.mxu0 0.0
        %677 = vmatpush1.msra.mxu0 0.0
        %678 = vmatprep.subr.mxu0 0.0
        %679 = vmatpush1.msra.mxu0 0.0
        %680 = vmatprep.subr.mxu0 0.0
        %681 = vmatpush1.msra.mxu0 0.0
        %682 = vmatprep.subr.mxu0 0.0
        %683 = vmatpush1.msra.mxu0 0.0
        %684 = vmatprep.subr.mxu0 0.0
        %685 = vmatpush1.msra.mxu0 0.0
        %686 = vmatprep.subr.mxu0 0.0
        %687 = vmatpush1.msra.mxu0 0.0
        %688 = vmatprep.subr.mxu0 0.0
        %689 = vmatpush1.msra.mxu0 0.0
        %690 = vmatprep.subr.mxu0 0.0
        %691 = vmatpush1.msra.mxu0 0.0
        %692 = vmatprep.subr.mxu0 0.0
        %693 = vmatpush1.msra.mxu0 0.0
        %694 = vmatprep.subr.mxu0 0.0
        %695 = vmatpush1.msra.mxu0 0.0
        %696 = vmatprep.subr.mxu0 0.0
        %697 = vmatpush1.msra.mxu0 0.0
        %698 = vmatprep.subr.mxu0 0.0
        %699 = vmatpush1.msra.mxu0 0.0
        %700 = vmatprep.subr.mxu0 0.0
        %701 = vmatpush1.msra.mxu0 0.0
        %702 = vmatprep.subr.mxu0 0.0
        %703 = vmatpush1.msra.mxu0 0.0
        %704 = vmatprep.subr.mxu0 0.0
        %705 = vmatpush1.msra.mxu0 0.0
        %706 = vmatprep.subr.mxu0 0.0
        %707 = vmatpush1.msra.mxu0 0.0
        %708 = vmatprep.subr.mxu0 0.0
        %709 = vmatpush1.msra.mxu0 0.0
        %710 = vmatprep.subr.mxu0 0.0
        %711 = vmatpush1.msra.mxu0 0.0
        %712 = vmatprep.subr.mxu0 0.0
        %713 = vmatpush1.msra.mxu0 0.0
        %714 = vmatprep.subr.mxu0 0.0
        %715 = vmatpush1.msra.mxu0 0.0
        %716 = vmatprep.subr.mxu0 0.0
        %717 = vmatpush1.msra.mxu0 0.0
        %718 = vmatprep.subr.mxu0 0.0
        %719 = vmatpush1.msra.mxu0 0.0
        %720 = vmatprep.subr.mxu0 0.0
        %721 = vmatpush1.msra.mxu0 0.0
        %722 = vmatprep.subr.mxu0 0.0
        %723 = vmatpush1.msra.mxu0 0.0
        %724 = vmatprep.subr.mxu0 0.0
        %725 = vmatpush1.msra.mxu0 0.0
        %726 = vmatprep.subr.mxu0 0.0
        %727 = vmatpush1.msra.mxu0 0.0
        %728 = vmatprep.subr.mxu0 0.0
        %729 = vmatpush1.msra.mxu0 0.0
        %730 = vmatprep.mubr.f32.mxu0 0.0
        %731 = vmatmul.mubr.f32.gmra.mrb[0].mxu0 %v664
        %v732 = vpop.f32.mrb[0].mxu0
        %v733 = vadd.f32 %v660, %v732
        %v734 = vpop.f32.mrb[0].mxu0
        %735 = vdwg.mxu0
        %s736 = scalar_lea.vmem %s6, 32
        %v737 = vld [vmem:[%s736] sm:$0xff]
        %v738 = vld [vmem:[%s736 + $0x8] sm:$0xff]
        %v739 = vld [vmem:[%s736 + $0x10] sm:$0xff]
        %v740 = vld [vmem:[%s736 + $0x18] sm:$0xff]
        %s741 = scalar_lea.vmem [#allocation13], 1
        %v742 = vld [vmem:[%s741] sm:$0x1]
        %v744 = vlaneseq
        %v745 = vshrl.u32 %v744, 7
        %v746 = vsub.s32 0, %v745
        %v747 = vrot.slane %v742, %v746
        %749 = vmatprep.subr.mxu0 0.0
        %750 = vmatpush1.msra.mxu0 %v737
        %751 = vmatprep.subr.mxu0 0.0
        %752 = vmatpush1.msra.mxu0 %v738
        %753 = vmatprep.subr.mxu0 0.0
        %754 = vmatpush1.msra.mxu0 %v739
        %755 = vmatprep.subr.mxu0 0.0
        %756 = vmatpush1.msra.mxu0 %v740
        %757 = vmatprep.subr.mxu0 0.0
        %758 = vmatpush1.msra.mxu0 0.0
        %759 = vmatprep.subr.mxu0 0.0
        %760 = vmatpush1.msra.mxu0 0.0
        %761 = vmatprep.subr.mxu0 0.0
        %762 = vmatpush1.msra.mxu0 0.0
        %763 = vmatprep.subr.mxu0 0.0
        %764 = vmatpush1.msra.mxu0 0.0
        %765 = vmatprep.subr.mxu0 0.0
        %766 = vmatpush1.msra.mxu0 0.0
        %767 = vmatprep.subr.mxu0 0.0
        %768 = vmatpush1.msra.mxu0 0.0
        %769 = vmatprep.subr.mxu0 0.0
        %770 = vmatpush1.msra.mxu0 0.0
        %771 = vmatprep.subr.mxu0 0.0
        %772 = vmatpush1.msra.mxu0 0.0
        %773 = vmatprep.subr.mxu0 0.0
        %774 = vmatpush1.msra.mxu0 0.0
        %775 = vmatprep.subr.mxu0 0.0
        %776 = vmatpush1.msra.mxu0 0.0
        %777 = vmatprep.subr.mxu0 0.0
        %778 = vmatpush1.msra.mxu0 0.0
        %779 = vmatprep.subr.mxu0 0.0
        %780 = vmatpush1.msra.mxu0 0.0
        %781 = vmatprep.subr.mxu0 0.0
        %782 = vmatpush1.msra.mxu0 0.0
        %783 = vmatprep.subr.mxu0 0.0
        %784 = vmatpush1.msra.mxu0 0.0
        %785 = vmatprep.subr.mxu0 0.0
        %786 = vmatpush1.msra.mxu0 0.0
        %787 = vmatprep.subr.mxu0 0.0
        %788 = vmatpush1.msra.mxu0 0.0
        %789 = vmatprep.subr.mxu0 0.0
        %790 = vmatpush1.msra.mxu0 0.0
        %791 = vmatprep.subr.mxu0 0.0
        %792 = vmatpush1.msra.mxu0 0.0
        %793 = vmatprep.subr.mxu0 0.0
        %794 = vmatpush1.msra.mxu0 0.0
        %795 = vmatprep.subr.mxu0 0.0
        %796 = vmatpush1.msra.mxu0 0.0
        %797 = vmatprep.subr.mxu0 0.0
        %798 = vmatpush1.msra.mxu0 0.0
        %799 = vmatprep.subr.mxu0 0.0
        %800 = vmatpush1.msra.mxu0 0.0
        %801 = vmatprep.subr.mxu0 0.0
        %802 = vmatpush1.msra.mxu0 0.0
        %803 = vmatprep.subr.mxu0 0.0
        %804 = vmatpush1.msra.mxu0 0.0
        %805 = vmatprep.subr.mxu0 0.0
        %806 = vmatpush1.msra.mxu0 0.0
        %807 = vmatprep.subr.mxu0 0.0
        %808 = vmatpush1.msra.mxu0 0.0
        %809 = vmatprep.subr.mxu0 0.0
        %810 = vmatpush1.msra.mxu0 0.0
        %811 = vmatprep.subr.mxu0 0.0
        %812 = vmatpush1.msra.mxu0 0.0
        %813 = vmatprep.mubr.f32.mxu0 0.0
        %814 = vmatmul.mubr.f32.gmra.mrb[0].mxu0 %v664
        %v815 = vpop.f32.mrb[0].mxu0
        %v816 = vadd.f32 %v747, %v815
        %v817 = vpop.f32.mrb[0].mxu0
        %818 = vdwg.mxu0
        %s819 = scalar_lea.vmem %s6, 64
        %v820 = vld [vmem:[%s819] sm:$0xff]
        %v821 = vld [vmem:[%s819 + $0x8] sm:$0xff]
        %v822 = vld [vmem:[%s819 + $0x10] sm:$0xff]
        %v823 = vld [vmem:[%s819 + $0x18] sm:$0xff]
        %s824 = scalar_lea.vmem [#allocation13], 2
        %v825 = vld [vmem:[%s824] sm:$0x1]
        %v827 = vlaneseq
        %v828 = vshrl.u32 %v827, 7
        %v829 = vsub.s32 0, %v828
        %v830 = vrot.slane %v825, %v829
        %832 = vmatprep.subr.mxu0 0.0
        %833 = vmatpush1.msra.mxu0 %v820
        %834 = vmatprep.subr.mxu0 0.0
        %835 = vmatpush1.msra.mxu0 %v821
        %836 = vmatprep.subr.mxu0 0.0
        %837 = vmatpush1.msra.mxu0 %v822
        %838 = vmatprep.subr.mxu0 0.0
        %839 = vmatpush1.msra.mxu0 %v823
        %840 = vmatprep.subr.mxu0 0.0
        %841 = vmatpush1.msra.mxu0 0.0
        %842 = vmatprep.subr.mxu0 0.0
        %843 = vmatpush1.msra.mxu0 0.0
        %844 = vmatprep.subr.mxu0 0.0
        %845 = vmatpush1.msra.mxu0 0.0
        %846 = vmatprep.subr.mxu0 0.0
        %847 = vmatpush1.msra.mxu0 0.0
        %848 = vmatprep.subr.mxu0 0.0
        %849 = vmatpush1.msra.mxu0 0.0
        %850 = vmatprep.subr.mxu0 0.0
        %851 = vmatpush1.msra.mxu0 0.0
        %852 = vmatprep.subr.mxu0 0.0
        %853 = vmatpush1.msra.mxu0 0.0
        %854 = vmatprep.subr.mxu0 0.0
        %855 = vmatpush1.msra.mxu0 0.0
        %856 = vmatprep.subr.mxu0 0.0
        %857 = vmatpush1.msra.mxu0 0.0
        %858 = vmatprep.subr.mxu0 0.0
        %859 = vmatpush1.msra.mxu0 0.0
        %860 = vmatprep.subr.mxu0 0.0
        %861 = vmatpush1.msra.mxu0 0.0
        %862 = vmatprep.subr.mxu0 0.0
        %863 = vmatpush1.msra.mxu0 0.0
        %864 = vmatprep.subr.mxu0 0.0
        %865 = vmatpush1.msra.mxu0 0.0
        %866 = vmatprep.subr.mxu0 0.0
        %867 = vmatpush1.msra.mxu0 0.0
        %868 = vmatprep.subr.mxu0 0.0
        %869 = vmatpush1.msra.mxu0 0.0
        %870 = vmatprep.subr.mxu0 0.0
        %871 = vmatpush1.msra.mxu0 0.0
        %872 = vmatprep.subr.mxu0 0.0
        %873 = vmatpush1.msra.mxu0 0.0
        %874 = vmatprep.subr.mxu0 0.0
        %875 = vmatpush1.msra.mxu0 0.0
        %876 = vmatprep.subr.mxu0 0.0
        %877 = vmatpush1.msra.mxu0 0.0
        %878 = vmatprep.subr.mxu0 0.0
        %879 = vmatpush1.msra.mxu0 0.0
        %880 = vmatprep.subr.mxu0 0.0
        %881 = vmatpush1.msra.mxu0 0.0
        %882 = vmatprep.subr.mxu0 0.0
        %883 = vmatpush1.msra.mxu0 0.0
        %884 = vmatprep.subr.mxu0 0.0
        %885 = vmatpush1.msra.mxu0 0.0
        %886 = vmatprep.subr.mxu0 0.0
        %887 = vmatpush1.msra.mxu0 0.0
        %888 = vmatprep.subr.mxu0 0.0
        %889 = vmatpush1.msra.mxu0 0.0
        %890 = vmatprep.subr.mxu0 0.0
        %891 = vmatpush1.msra.mxu0 0.0
        %892 = vmatprep.subr.mxu0 0.0
        %893 = vmatpush1.msra.mxu0 0.0
        %894 = vmatprep.subr.mxu0 0.0
        %895 = vmatpush1.msra.mxu0 0.0
        %896 = vmatprep.mubr.f32.mxu0 0.0
        %897 = vmatmul.mubr.f32.gmra.mrb[0].mxu0 %v664
        %v898 = vpop.f32.mrb[0].mxu0
        %v899 = vadd.f32 %v830, %v898
        %v900 = vpop.f32.mrb[0].mxu0
        %901 = vdwg.mxu0
        %v902 = vld [vmem:[#allocation10] sm:$0xff]
        %v903 = vld [vmem:[#allocation10 + $0x8] sm:$0xff]
        %v904 = vld [vmem:[#allocation10 + $0x10] sm:$0xff]
        %v905 = vld [vmem:[#allocation10 + $0x18] sm:$0xff]
        %v906 = vld [vmem:[#allocation12] sm:$0x1]
        %v908 = vlaneseq
        %v909 = vshrl.u32 %v908, 7
        %v910 = vsub.s32 0, %v909
        %v911 = vrot.slane %v906, %v910
        %v914 = vsel %vm662, %v650, 0
        %916 = vmatprep.subr.mxu0 0.0
        %917 = vmatpush1.msra.mxu0 %v902
        %918 = vmatprep.subr.mxu0 0.0
        %919 = vmatpush1.msra.mxu0 %v903
        %920 = vmatprep.subr.mxu0 0.0
        %921 = vmatpush1.msra.mxu0 %v904
        %922 = vmatprep.subr.mxu0 0.0
        %923 = vmatpush1.msra.mxu0 %v905
        %924 = vmatprep.subr.mxu0 0.0
        %925 = vmatpush1.msra.mxu0 0.0
        %926 = vmatprep.subr.mxu0 0.0
        %927 = vmatpush1.msra.mxu0 0.0
        %928 = vmatprep.subr.mxu0 0.0
        %929 = vmatpush1.msra.mxu0 0.0
        %930 = vmatprep.subr.mxu0 0.0
        %931 = vmatpush1.msra.mxu0 0.0
        %932 = vmatprep.subr.mxu0 0.0
        %933 = vmatpush1.msra.mxu0 0.0
        %934 = vmatprep.subr.mxu0 0.0
        %935 = vmatpush1.msra.mxu0 0.0
        %936 = vmatprep.subr.mxu0 0.0
        %937 = vmatpush1.msra.mxu0 0.0
        %938 = vmatprep.subr.mxu0 0.0
        %939 = vmatpush1.msra.mxu0 0.0
        %940 = vmatprep.subr.mxu0 0.0
        %941 = vmatpush1.msra.mxu0 0.0
        %942 = vmatprep.subr.mxu0 0.0
        %943 = vmatpush1.msra.mxu0 0.0
        %944 = vmatprep.subr.mxu0 0.0
        %945 = vmatpush1.msra.mxu0 0.0
        %946 = vmatprep.subr.mxu0 0.0
        %947 = vmatpush1.msra.mxu0 0.0
        %948 = vmatprep.subr.mxu0 0.0
        %949 = vmatpush1.msra.mxu0 0.0
        %950 = vmatprep.subr.mxu0 0.0
        %951 = vmatpush1.msra.mxu0 0.0
        %952 = vmatprep.subr.mxu0 0.0
        %953 = vmatpush1.msra.mxu0 0.0
        %954 = vmatprep.subr.mxu0 0.0
        %955 = vmatpush1.msra.mxu0 0.0
        %956 = vmatprep.subr.mxu0 0.0
        %957 = vmatpush1.msra.mxu0 0.0
        %958 = vmatprep.subr.mxu0 0.0
        %959 = vmatpush1.msra.mxu0 0.0
        %960 = vmatprep.subr.mxu0 0.0
        %961 = vmatpush1.msra.mxu0 0.0
        %962 = vmatprep.subr.mxu0 0.0
        %963 = vmatpush1.msra.mxu0 0.0
        %964 = vmatprep.subr.mxu0 0.0
        %965 = vmatpush1.msra.mxu0 0.0
        %966 = vmatprep.subr.mxu0 0.0
        %967 = vmatpush1.msra.mxu0 0.0
        %968 = vmatprep.subr.mxu0 0.0
        %969 = vmatpush1.msra.mxu0 0.0
        %970 = vmatprep.subr.mxu0 0.0
        %971 = vmatpush1.msra.mxu0 0.0
        %972 = vmatprep.subr.mxu0 0.0
        %973 = vmatpush1.msra.mxu0 0.0
        %974 = vmatprep.subr.mxu0 0.0
        %975 = vmatpush1.msra.mxu0 0.0
        %976 = vmatprep.subr.mxu0 0.0
        %977 = vmatpush1.msra.mxu0 0.0
        %978 = vmatprep.subr.mxu0 0.0
        %979 = vmatpush1.msra.mxu0 0.0
        %980 = vmatprep.mubr.f32.mxu0 0.0
        %981 = vmatmul.mubr.f32.gmra.mrb[0].mxu0 %v914
        %v982 = vpop.f32.mrb[0].mxu0
        %v983 = vadd.f32 %v911, %v982
        %v984 = vpop.f32.mrb[0].mxu0
        %985 = vdwg.mxu0
        %s986 = scalar_lea.vmem [#allocation10], 32
        %v987 = vld [vmem:[%s986] sm:$0xff]
        %v988 = vld [vmem:[%s986 + $0x8] sm:$0xff]
        %v989 = vld [vmem:[%s986 + $0x10] sm:$0xff]
        %v990 = vld [vmem:[%s986 + $0x18] sm:$0xff]
        %s991 = scalar_lea.vmem [#allocation12], 1
        %v992 = vld [vmem:[%s991] sm:$0x1]
        %v994 = vlaneseq
        %v995 = vshrl.u32 %v994, 7
        %v996 = vsub.s32 0, %v995
        %v997 = vrot.slane %v992, %v996
        %999 = vmatprep.subr.mxu0 0.0
        %1000 = vmatpush1.msra.mxu0 %v987
        %1001 = vmatprep.subr.mxu0 0.0
        %1002 = vmatpush1.msra.mxu0 %v988
        %1003 = vmatprep.subr.mxu0 0.0
        %1004 = vmatpush1.msra.mxu0 %v989
        %1005 = vmatprep.subr.mxu0 0.0
        %1006 = vmatpush1.msra.mxu0 %v990
        %1007 = vmatprep.subr.mxu0 0.0
        %1008 = vmatpush1.msra.mxu0 0.0
        %1009 = vmatprep.subr.mxu0 0.0
        %1010 = vmatpush1.msra.mxu0 0.0
        %1011 = vmatprep.subr.mxu0 0.0
        %1012 = vmatpush1.msra.mxu0 0.0
        %1013 = vmatprep.subr.mxu0 0.0
        %1014 = vmatpush1.msra.mxu0 0.0
        %1015 = vmatprep.subr.mxu0 0.0
        %1016 = vmatpush1.msra.mxu0 0.0
        %1017 = vmatprep.subr.mxu0 0.0
        %1018 = vmatpush1.msra.mxu0 0.0
        %1019 = vmatprep.subr.mxu0 0.0
        %1020 = vmatpush1.msra.mxu0 0.0
        %1021 = vmatprep.subr.mxu0 0.0
        %1022 = vmatpush1.msra.mxu0 0.0
        %1023 = vmatprep.subr.mxu0 0.0
        %1024 = vmatpush1.msra.mxu0 0.0
        %1025 = vmatprep.subr.mxu0 0.0
        %1026 = vmatpush1.msra.mxu0 0.0
        %1027 = vmatprep.subr.mxu0 0.0
        %1028 = vmatpush1.msra.mxu0 0.0
        %1029 = vmatprep.subr.mxu0 0.0
        %1030 = vmatpush1.msra.mxu0 0.0
        %1031 = vmatprep.subr.mxu0 0.0
        %1032 = vmatpush1.msra.mxu0 0.0
        %1033 = vmatprep.subr.mxu0 0.0
        %1034 = vmatpush1.msra.mxu0 0.0
        %1035 = vmatprep.subr.mxu0 0.0
        %1036 = vmatpush1.msra.mxu0 0.0
        %1037 = vmatprep.subr.mxu0 0.0
        %1038 = vmatpush1.msra.mxu0 0.0
        %1039 = vmatprep.subr.mxu0 0.0
        %1040 = vmatpush1.msra.mxu0 0.0
        %1041 = vmatprep.subr.mxu0 0.0
        %1042 = vmatpush1.msra.mxu0 0.0
        %1043 = vmatprep.subr.mxu0 0.0
        %1044 = vmatpush1.msra.mxu0 0.0
        %1045 = vmatprep.subr.mxu0 0.0
        %1046 = vmatpush1.msra.mxu0 0.0
        %1047 = vmatprep.subr.mxu0 0.0
        %1048 = vmatpush1.msra.mxu0 0.0
        %1049 = vmatprep.subr.mxu0 0.0
        %1050 = vmatpush1.msra.mxu0 0.0
        %1051 = vmatprep.subr.mxu0 0.0
        %1052 = vmatpush1.msra.mxu0 0.0
        %1053 = vmatprep.subr.mxu0 0.0
        %1054 = vmatpush1.msra.mxu0 0.0
        %1055 = vmatprep.subr.mxu0 0.0
        %1056 = vmatpush1.msra.mxu0 0.0
        %1057 = vmatprep.subr.mxu0 0.0
        %1058 = vmatpush1.msra.mxu0 0.0
        %1059 = vmatprep.subr.mxu0 0.0
        %1060 = vmatpush1.msra.mxu0 0.0
        %1061 = vmatprep.subr.mxu0 0.0
        %1062 = vmatpush1.msra.mxu0 0.0
        %1063 = vmatprep.mubr.f32.mxu0 0.0
        %1064 = vmatmul.mubr.f32.gmra.mrb[0].mxu0 %v914
        %v1065 = vpop.f32.mrb[0].mxu0
        %v1066 = vadd.f32 %v997, %v1065
        %v1067 = vpop.f32.mrb[0].mxu0
        %1068 = vdwg.mxu0
        %s1069 = scalar_lea.vmem [#allocation10], 64
        %v1070 = vld [vmem:[%s1069] sm:$0xff]
        %v1071 = vld [vmem:[%s1069 + $0x8] sm:$0xff]
        %v1072 = vld [vmem:[%s1069 + $0x10] sm:$0xff]
        %v1073 = vld [vmem:[%s1069 + $0x18] sm:$0xff]
        %s1074 = scalar_lea.vmem [#allocation12], 2
        %v1075 = vld [vmem:[%s1074] sm:$0x1]
        %v1077 = vlaneseq
        %v1078 = vshrl.u32 %v1077, 7
        %v1079 = vsub.s32 0, %v1078
        %v1080 = vrot.slane %v1075, %v1079
        %1082 = vmatprep.subr.mxu0 0.0
        %1083 = vmatpush1.msra.mxu0 %v1070
        %1084 = vmatprep.subr.mxu0 0.0
        %1085 = vmatpush1.msra.mxu0 %v1071
        %1086 = vmatprep.subr.mxu0 0.0
        %1087 = vmatpush1.msra.mxu0 %v1072
        %1088 = vmatprep.subr.mxu0 0.0
        %1089 = vmatpush1.msra.mxu0 %v1073
        %1090 = vmatprep.subr.mxu0 0.0
        %1091 = vmatpush1.msra.mxu0 0.0
        %1092 = vmatprep.subr.mxu0 0.0
        %1093 = vmatpush1.msra.mxu0 0.0
        %1094 = vmatprep.subr.mxu0 0.0
        %1095 = vmatpush1.msra.mxu0 0.0
        %1096 = vmatprep.subr.mxu0 0.0
        %1097 = vmatpush1.msra.mxu0 0.0
        %1098 = vmatprep.subr.mxu0 0.0
        %1099 = vmatpush1.msra.mxu0 0.0
        %1100 = vmatprep.subr.mxu0 0.0
        %1101 = vmatpush1.msra.mxu0 0.0
        %1102 = vmatprep.subr.mxu0 0.0
        %1103 = vmatpush1.msra.mxu0 0.0
        %1104 = vmatprep.subr.mxu0 0.0
        %1105 = vmatpush1.msra.mxu0 0.0
        %1106 = vmatprep.subr.mxu0 0.0
        %1107 = vmatpush1.msra.mxu0 0.0
        %1108 = vmatprep.subr.mxu0 0.0
        %1109 = vmatpush1.msra.mxu0 0.0
        %1110 = vmatprep.subr.mxu0 0.0
        %1111 = vmatpush1.msra.mxu0 0.0
        %1112 = vmatprep.subr.mxu0 0.0
        %1113 = vmatpush1.msra.mxu0 0.0
        %1114 = vmatprep.subr.mxu0 0.0
        %1115 = vmatpush1.msra.mxu0 0.0
        %1116 = vmatprep.subr.mxu0 0.0
        %1117 = vmatpush1.msra.mxu0 0.0
        %1118 = vmatprep.subr.mxu0 0.0
        %1119 = vmatpush1.msra.mxu0 0.0
        %1120 = vmatprep.subr.mxu0 0.0
        %1121 = vmatpush1.msra.mxu0 0.0
        %1122 = vmatprep.subr.mxu0 0.0
        %1123 = vmatpush1.msra.mxu0 0.0
        %1124 = vmatprep.subr.mxu0 0.0
        %1125 = vmatpush1.msra.mxu0 0.0
        %1126 = vmatprep.subr.mxu0 0.0
        %1127 = vmatpush1.msra.mxu0 0.0
        %1128 = vmatprep.subr.mxu0 0.0
        %1129 = vmatpush1.msra.mxu0 0.0
        %1130 = vmatprep.subr.mxu0 0.0
        %1131 = vmatpush1.msra.mxu0 0.0
        %1132 = vmatprep.subr.mxu0 0.0
        %1133 = vmatpush1.msra.mxu0 0.0
        %1134 = vmatprep.subr.mxu0 0.0
        %1135 = vmatpush1.msra.mxu0 0.0
        %1136 = vmatprep.subr.mxu0 0.0
        %1137 = vmatpush1.msra.mxu0 0.0
        %1138 = vmatprep.subr.mxu0 0.0
        %1139 = vmatpush1.msra.mxu0 0.0
        %1140 = vmatprep.subr.mxu0 0.0
        %1141 = vmatpush1.msra.mxu0 0.0
        %1142 = vmatprep.subr.mxu0 0.0
        %1143 = vmatpush1.msra.mxu0 0.0
        %1144 = vmatprep.subr.mxu0 0.0
        %1145 = vmatpush1.msra.mxu0 0.0
        %1146 = vmatprep.mubr.f32.mxu0 0.0
        %1147 = vmatmul.mubr.f32.gmra.mrb[0].mxu0 %v914
        %v1148 = vpop.f32.mrb[0].mxu0
        %v1149 = vadd.f32 %v1080, %v1148
        %v1150 = vpop.f32.mrb[0].mxu0
        %1151 = vdwg.mxu0
        %v1152 = vadd.f32 %v983, %v733
        %v1153 = vxor.u32 %v1152, 2147483648
        %v1154 = vmul.f32 %v1153, 1.442695
        %v1155 = vpow.pop %v1154
        %v1156 = vadd.f32 %v1155, 1.0
        %v1157 = vrcp.pop %v1156
        %v1158 = vmul.f32 1.0, %v1157
        %v1159 = vadd.f32 %v1066, %v816
        %v1160 = vxor.u32 %v1159, 2147483648
        %v1161 = vmul.f32 %v1160, 1.442695
        %v1162 = vpow.pop %v1161
        %v1163 = vadd.f32 %v1162, 1.0
        %v1164 = vrcp.pop %v1163
        %v1165 = vmul.f32 1.0, %v1164
        %v1166 = vmul.f32 %v1158, %v899
        %v1167 = vadd.f32 %v1149, %v1166
        %v1168 = vtanh.pop %v1167
        %v1169 = vsub.f32 1.0, %v1165
        %v1170 = vmul.f32 %v1169, %v1168
        %v1171 = vmul.f32 %v1165, %v567
        %v1172 = vadd.f32 %v1170, %v1171
        %v1173 = vld [vmem:[#allocation15] sm:$0xff]
        %v1174 = vld [vmem:[#allocation15 + $0x8] sm:$0xff]
        %v1175 = vld [vmem:[#allocation15 + $0x10] sm:$0xff]
        %v1176 = vld [vmem:[#allocation15 + $0x18] sm:$0xff]
        %v1177 = vld [vmem:[%s9] sm:$0x1]
        %v1179 = vlaneseq
        %v1180 = vshrl.u32 %v1179, 7
        %v1181 = vsub.s32 0, %v1180
        %v1182 = vrot.slane %v1177, %v1181
        %v1185 = vsel %vm662, %v1172, 0
        %1187 = vmatprep.subr.mxu0 0.0
        %1188 = vmatpush1.msra.mxu0 %v1173
        %1189 = vmatprep.subr.mxu0 0.0
        %1190 = vmatpush1.msra.mxu0 %v1174
        %1191 = vmatprep.subr.mxu0 0.0
        %1192 = vmatpush1.msra.mxu0 %v1175
        %1193 = vmatprep.subr.mxu0 0.0
        %1194 = vmatpush1.msra.mxu0 %v1176
        %1195 = vmatprep.subr.mxu0 0.0
        %1196 = vmatpush1.msra.mxu0 0.0
        %1197 = vmatprep.subr.mxu0 0.0
        %1198 = vmatpush1.msra.mxu0 0.0
        %1199 = vmatprep.subr.mxu0 0.0
        %1200 = vmatpush1.msra.mxu0 0.0
        %1201 = vmatprep.subr.mxu0 0.0
        %1202 = vmatpush1.msra.mxu0 0.0
        %1203 = vmatprep.subr.mxu0 0.0
        %1204 = vmatpush1.msra.mxu0 0.0
        %1205 = vmatprep.subr.mxu0 0.0
        %1206 = vmatpush1.msra.mxu0 0.0
        %1207 = vmatprep.subr.mxu0 0.0
        %1208 = vmatpush1.msra.mxu0 0.0
        %1209 = vmatprep.subr.mxu0 0.0
        %1210 = vmatpush1.msra.mxu0 0.0
        %1211 = vmatprep.subr.mxu0 0.0
        %1212 = vmatpush1.msra.mxu0 0.0
        %1213 = vmatprep.subr.mxu0 0.0
        %1214 = vmatpush1.msra.mxu0 0.0
        %1215 = vmatprep.subr.mxu0 0.0
        %1216 = vmatpush1.msra.mxu0 0.0
        %1217 = vmatprep.subr.mxu0 0.0
        %1218 = vmatpush1.msra.mxu0 0.0
        %1219 = vmatprep.subr.mxu0 0.0
        %1220 = vmatpush1.msra.mxu0 0.0
        %1221 = vmatprep.subr.mxu0 0.0
        %1222 = vmatpush1.msra.mxu0 0.0
        %1223 = vmatprep.subr.mxu0 0.0
        %1224 = vmatpush1.msra.mxu0 0.0
        %1225 = vmatprep.subr.mxu0 0.0
        %1226 = vmatpush1.msra.mxu0 0.0
        %1227 = vmatprep.subr.mxu0 0.0
        %1228 = vmatpush1.msra.mxu0 0.0
        %1229 = vmatprep.subr.mxu0 0.0
        %1230 = vmatpush1.msra.mxu0 0.0
        %1231 = vmatprep.subr.mxu0 0.0
        %1232 = vmatpush1.msra.mxu0 0.0
        %1233 = vmatprep.subr.mxu0 0.0
        %1234 = vmatpush1.msra.mxu0 0.0
        %1235 = vmatprep.subr.mxu0 0.0
        %1236 = vmatpush1.msra.mxu0 0.0
        %1237 = vmatprep.subr.mxu0 0.0
        %1238 = vmatpush1.msra.mxu0 0.0
        %1239 = vmatprep.subr.mxu0 0.0
        %1240 = vmatpush1.msra.mxu0 0.0
        %1241 = vmatprep.subr.mxu0 0.0
        %1242 = vmatpush1.msra.mxu0 0.0
        %1243 = vmatprep.subr.mxu0 0.0
        %1244 = vmatpush1.msra.mxu0 0.0
        %1245 = vmatprep.subr.mxu0 0.0
        %1246 = vmatpush1.msra.mxu0 0.0
        %1247 = vmatprep.subr.mxu0 0.0
        %1248 = vmatpush1.msra.mxu0 0.0
        %1249 = vmatprep.subr.mxu0 0.0
        %1250 = vmatpush1.msra.mxu0 0.0
        %1251 = vmatprep.mubr.f32.mxu0 0.0
        %1252 = vmatmul.mubr.f32.gmra.mrb[0].mxu0 %v1185
        %v1253 = vpop.f32.mrb[0].mxu0
        %v1254 = vadd.f32 %v1182, %v1253
        %v1255 = vpop.f32.mrb[0].mxu0
        %1256 = vdwg.mxu0
        %v1257 = vtanh.pop %v1254
        %v1258 = vld [vmem:[%s10] sm:$0xff]
        %v1259 = vld [vmem:[%s10 + $0x8] sm:$0xff]
        %v1260 = vld [vmem:[%s10 + $0x10] sm:$0xff]
        %v1261 = vld [vmem:[%s10 + $0x18] sm:$0xff]
        %v1262 = vld [vmem:[%s11] sm:$0x1]
        %v1264 = vlaneseq
        %v1265 = vshrl.u32 %v1264, 7
        %v1266 = vsub.s32 0, %v1265
        %v1267 = vrot.slane %v1262, %v1266
        %v1270 = vsel %vm662, %v1257, 0
        %1272 = vmatprep.subr.mxu0 0.0
        %1273 = vmatpush1.msra.mxu0 %v1258
        %1274 = vmatprep.subr.mxu0 0.0
        %1275 = vmatpush1.msra.mxu0 %v1259
        %1276 = vmatprep.subr.mxu0 0.0
        %1277 = vmatpush1.msra.mxu0 %v1260
        %1278 = vmatprep.subr.mxu0 0.0
        %1279 = vmatpush1.msra.mxu0 %v1261
        %1280 = vmatprep.subr.mxu0 0.0
        %1281 = vmatpush1.msra.mxu0 0.0
        %1282 = vmatprep.subr.mxu0 0.0
        %1283 = vmatpush1.msra.mxu0 0.0
        %1284 = vmatprep.subr.mxu0 0.0
        %1285 = vmatpush1.msra.mxu0 0.0
        %1286 = vmatprep.subr.mxu0 0.0
        %1287 = vmatpush1.msra.mxu0 0.0
        %1288 = vmatprep.subr.mxu0 0.0
        %1289 = vmatpush1.msra.mxu0 0.0
        %1290 = vmatprep.subr.mxu0 0.0
        %1291 = vmatpush1.msra.mxu0 0.0
        %1292 = vmatprep.subr.mxu0 0.0
        %1293 = vmatpush1.msra.mxu0 0.0
        %1294 = vmatprep.subr.mxu0 0.0
        %1295 = vmatpush1.msra.mxu0 0.0
        %1296 = vmatprep.subr.mxu0 0.0
        %1297 = vmatpush1.msra.mxu0 0.0
        %1298 = vmatprep.subr.mxu0 0.0
        %1299 = vmatpush1.msra.mxu0 0.0
        %1300 = vmatprep.subr.mxu0 0.0
        %1301 = vmatpush1.msra.mxu0 0.0
        %1302 = vmatprep.subr.mxu0 0.0
        %1303 = vmatpush1.msra.mxu0 0.0
        %1304 = vmatprep.subr.mxu0 0.0
        %1305 = vmatpush1.msra.mxu0 0.0
        %1306 = vmatprep.subr.mxu0 0.0
        %1307 = vmatpush1.msra.mxu0 0.0
        %1308 = vmatprep.subr.mxu0 0.0
        %1309 = vmatpush1.msra.mxu0 0.0
        %1310 = vmatprep.subr.mxu0 0.0
        %1311 = vmatpush1.msra.mxu0 0.0
        %1312 = vmatprep.subr.mxu0 0.0
        %1313 = vmatpush1.msra.mxu0 0.0
        %1314 = vmatprep.subr.mxu0 0.0
        %1315 = vmatpush1.msra.mxu0 0.0
        %1316 = vmatprep.subr.mxu0 0.0
        %1317 = vmatpush1.msra.mxu0 0.0
        %1318 = vmatprep.subr.mxu0 0.0
        %1319 = vmatpush1.msra.mxu0 0.0
        %1320 = vmatprep.subr.mxu0 0.0
        %1321 = vmatpush1.msra.mxu0 0.0
        %1322 = vmatprep.subr.mxu0 0.0
        %1323 = vmatpush1.msra.mxu0 0.0
        %1324 = vmatprep.subr.mxu0 0.0
        %1325 = vmatpush1.msra.mxu0 0.0
        %1326 = vmatprep.subr.mxu0 0.0
        %1327 = vmatpush1.msra.mxu0 0.0
        %1328 = vmatprep.subr.mxu0 0.0
        %1329 = vmatpush1.msra.mxu0 0.0
        %1330 = vmatprep.subr.mxu0 0.0
        %1331 = vmatpush1.msra.mxu0 0.0
        %1332 = vmatprep.subr.mxu0 0.0
        %1333 = vmatpush1.msra.mxu0 0.0
        %1334 = vmatprep.subr.mxu0 0.0
        %1335 = vmatpush1.msra.mxu0 0.0
        %1336 = vmatprep.mubr.f32.mxu0 0.0
        %1337 = vmatmul.mubr.f32.gmra.mrb[0].mxu0 %v1270
        %v1338 = vpop.f32.mrb[0].mxu0
        %v1339 = vadd.f32 %v1267, %v1338
        %v1340 = vpop.f32.mrb[0].mxu0
        %1341 = vdwg.mxu0
        %v1342 = vmul.f32 %v650, %v650
        %v1343 = vsub.f32 1.0, %v1342
        %v1344 = vld [vmem:[%s12] sm:$0x1]
        %v1346 = vlaneseq
        %v1347 = vshrl.u32 %v1346, 7
        %v1348 = vsub.s32 0, %v1347
        %v1349 = vrot.slane %v1344, %v1348
        %1350 = vrot.lane.b32.xlu0 %v1349, 32
        %v1351 = vpop.permute.xlu0 %1350
        %v1353 = vmul.f32 %v1343, %v1351
        %v1354 = vld [vmem:[%s13] sm:$0xff]
        %v1355 = vld [vmem:[%s13 + $0x8] sm:$0xff]
        %v1356 = vld [vmem:[%s13 + $0x10] sm:$0xff]
        %v1357 = vld [vmem:[%s13 + $0x18] sm:$0xff]
        %1359 = vrot.lane.b32.xlu0 %v1353, 96
        %v1360 = vpop.permute.xlu0 %1359
        %v1361 = vsel %vm662, %v1360, 0
        %1363 = vmatprep.subr.mxu0 0.0
        %1364 = vmatpush1.msra.mxu0 %v1354
        %1365 = vmatprep.subr.mxu0 0.0
        %1366 = vmatpush1.msra.mxu0 %v1355
        %1367 = vmatprep.subr.mxu0 0.0
        %1368 = vmatpush1.msra.mxu0 %v1356
        %1369 = vmatprep.subr.mxu0 0.0
        %1370 = vmatpush1.msra.mxu0 %v1357
        %1371 = vmatprep.subr.mxu0 0.0
        %1372 = vmatpush1.msra.mxu0 0.0
        %1373 = vmatprep.subr.mxu0 0.0
        %1374 = vmatpush1.msra.mxu0 0.0
        %1375 = vmatprep.subr.mxu0 0.0
        %1376 = vmatpush1.msra.mxu0 0.0
        %1377 = vmatprep.subr.mxu0 0.0
        %1378 = vmatpush1.msra.mxu0 0.0
        %1379 = vmatprep.subr.mxu0 0.0
        %1380 = vmatpush1.msra.mxu0 0.0
        %1381 = vmatprep.subr.mxu0 0.0
        %1382 = vmatpush1.msra.mxu0 0.0
        %1383 = vmatprep.subr.mxu0 0.0
        %1384 = vmatpush1.msra.mxu0 0.0
        %1385 = vmatprep.subr.mxu0 0.0
        %1386 = vmatpush1.msra.mxu0 0.0
        %1387 = vmatprep.subr.mxu0 0.0
        %1388 = vmatpush1.msra.mxu0 0.0
        %1389 = vmatprep.subr.mxu0 0.0
        %1390 = vmatpush1.msra.mxu0 0.0
        %1391 = vmatprep.subr.mxu0 0.0
        %1392 = vmatpush1.msra.mxu0 0.0
        %1393 = vmatprep.subr.mxu0 0.0
        %1394 = vmatpush1.msra.mxu0 0.0
        %1395 = vmatprep.subr.mxu0 0.0
        %1396 = vmatpush1.msra.mxu0 0.0
        %1397 = vmatprep.subr.mxu0 0.0
        %1398 = vmatpush1.msra.mxu0 0.0
        %1399 = vmatprep.subr.mxu0 0.0
        %1400 = vmatpush1.msra.mxu0 0.0
        %1401 = vmatprep.subr.mxu0 0.0
        %1402 = vmatpush1.msra.mxu0 0.0
        %1403 = vmatprep.subr.mxu0 0.0
        %1404 = vmatpush1.msra.mxu0 0.0
        %1405 = vmatprep.subr.mxu0 0.0
        %1406 = vmatpush1.msra.mxu0 0.0
        %1407 = vmatprep.subr.mxu0 0.0
        %1408 = vmatpush1.msra.mxu0 0.0
        %1409 = vmatprep.subr.mxu0 0.0
        %1410 = vmatpush1.msra.mxu0 0.0
        %1411 = vmatprep.subr.mxu0 0.0
        %1412 = vmatpush1.msra.mxu0 0.0
        %1413 = vmatprep.subr.mxu0 0.0
        %1414 = vmatpush1.msra.mxu0 0.0
        %1415 = vmatprep.subr.mxu0 0.0
        %1416 = vmatpush1.msra.mxu0 0.0
        %1417 = vmatprep.subr.mxu0 0.0
        %1418 = vmatpush1.msra.mxu0 0.0
        %1419 = vmatprep.subr.mxu0 0.0
        %1420 = vmatpush1.msra.mxu0 0.0
        %1421 = vmatprep.subr.mxu0 0.0
        %1422 = vmatpush1.msra.mxu0 0.0
        %1423 = vmatprep.subr.mxu0 0.0
        %1424 = vmatpush1.msra.mxu0 0.0
        %1425 = vmatprep.subr.mxu0 0.0
        %1426 = vmatpush1.msra.mxu0 0.0
        %1427 = vmatprep.mubr.f32.mxu0 0.0
        %1428 = vmatmul.mubr.f32.gmra.mrb[0].mxu0 %v1361
        %v1429 = vpop.f32.mrb[0].mxu0
        %v1430 = vadd.f32 0.0, %v1429
        %v1431 = vpop.f32.mrb[0].mxu0
        %1432 = vdwg.mxu0
        %v1433 = vadd.f32 %v1339, %v1430
        %v1434 = vadd.f32 %v566, %v1433
        %1435 = vst.msk [vmem:[#allocation2] sm:$0xff] %vm576, %v1434
        %1436 = vst.msk [vmem:[#allocation3] sm:$0xff] %vm662, %v1172
        %s1437 = smul.u32 %s33, 8
        %s1438 = scalar_lea.vmem [#allocation16], %s1437
        %1439 = vst.msk [vmem:[%s1438] sm:$0xff] %vm576, %v1434
        %1440 = vst.msk [vmem:[#allocation17] sm:$0xff] %vm662, %v1172
        // Predicated region
        $region109: #{tpu_custom_call.1} parent=75 // pred_check
          %p1441 = pneg %p340
        $region110: #{tpu_custom_call.1} parent=75 // pred_check_branch
          %1443 = sbr.rel (%p1441) target = $region112
        $region111: #{tpu_custom_call.1} parent=75 // pred_region
          %s1445 = ssub.s32 1024, 1024
          %1446 = vsyncadd [#allocation6], %s1445
          %s1447 = sshll.u32 [#allocation16], 4
          %s1448 = int_to_ptr.vmem [resolvable:$true] %s1447
          %1453 = dma.vmem_to_hbm [thread:$0]  %s1448, 1024, %s14, [#allocation6], 128, 128, 8
        $region112: #{tpu_custom_call.1} parent=75 // pred_fallthru
          _
        // Predicated region
        $region113: #{tpu_custom_call.1} parent=75 // pred_check
          %p1454 = pneg %p361
        $region114: #{tpu_custom_call.1} parent=75 // pred_check_branch
          %1456 = sbr.rel (%p1454) target = $region116
        $region115: #{tpu_custom_call.1} parent=75 // pred_region
          %s1458 = ssub.s32 128, 128
          %1459 = vsyncadd [#allocation18], %s1458
          %s1461 = sshll.u32 [#allocation17], 4
          %s1462 = int_to_ptr.vmem [resolvable:$true] %s1461
          %1464 = dma.vmem_to_hbm [thread:$0]  %s1462, 128, %s15, [#allocation18]
        $region116: #{tpu_custom_call.1} parent=75 // pred_fallthru
          _
        // Predicated region
        $region117: #{tpu_custom_call.1} parent=75 // pred_check
          %p1465 = pneg %p340
        $region118: #{tpu_custom_call.1} parent=75 // pred_check_branch
          %1467 = sbr.rel (%p1465) target = $region120
        $region119: #{tpu_custom_call.1} parent=75 // pred_region
          %1468 = dma.done [#allocation6], 1024
        $region120: #{tpu_custom_call.1} parent=75 // pred_fallthru
          _
        // Predicated region
        $region121: #{tpu_custom_call.1} parent=75 // pred_check
          %p1469 = pneg %p361
        $region122: #{tpu_custom_call.1} parent=75 // pred_check_branch
          %1471 = sbr.rel (%p1469) target = $region124
        $region123: #{tpu_custom_call.1} parent=75 // pred_region
          %1472 = dma.done [#allocation18], 128
        $region124: #{tpu_custom_call.1} parent=75 // pred_fallthru
          _
      $region76: #{tpu_custom_call.1} parent=5 // pred_fallthru
        _
      %p1473 = scmp.le.s32.totalorder 2, %s28
      // Predicated region
      $region125: #{tpu_custom_call.1} parent=5 // pred_check
        %p1474 = pneg %p1473
      $region126: #{tpu_custom_call.1} parent=5 // pred_check_branch
        %1476 = sbr.rel (%p1474) target = $region128
      $region127: #{tpu_custom_call.1} parent=5 // pred_region
        %s1477 = ssub.s32 %s28, 2
      $region128: #{tpu_custom_call.1} parent=5 // pred_fallthru
        _
    $region6: #{tpu_custom_call.1} parent=1 // loop_footer
      %s32 = sadd.s32 1, %s28
    $region7: #{tpu_custom_call.1} parent=1 // loop_footer_branch
      %27 = sbr.rel target = $region3
    $region8: #{tpu_custom_call.1} parent=1 // loop_exit
      _
    %1478 = vsyncpa [#allocation5], 1
    %s1479 = scalar_lea.sflag [#allocation5], 1
    %1480 = vsyncpa %s1479, 1
    %1481 = vsyncpa [#allocation8], 1
    %1482 = vsyncpa [#allocation11], 1
    %1483 = vsyncpa [#allocation14], 1
    %1484 = vsyncpa [#allocation6], 1
    %s1485 = scalar_lea.sflag [#allocation6], 1
    %1486 = vsyncpa %s1485, 1
    %1487 = vsyncpa [#allocation18], 1

</llo_original>
